<compile_context>
chip_gen: v6e
topology: v6e:2x2x1
jax: 0.10.0
libtpu: 0.0.40
codegen_flags: <defaults>
</compile_context>

<pallas_src>
import functools

import jax
import jax.numpy as jnp
from jax import lax
from jax.experimental import pallas as pl
from jax.experimental.pallas import tpu as pltpu


def _round_up(x: int, m: int) -> int:
    return ((x + m - 1) // m) * m


def _attn_kernel(q_ref, k_ref, v_ref, o_ref, m_sc, l_sc, acc_sc, *,
                 scale, n_k, block_k, mask_kv):
    # q_ref: (tq, D)   k_ref/v_ref: (tk, D)   o_ref: (tq, D)
    # m_sc/l_sc: (tq, 1) f32   acc_sc: (tq, D) f32
    kv = pl.program_id(2)

    @pl.when(kv == 0)
    def _init():
        m_sc[...] = jnp.full_like(m_sc, -jnp.inf)
        l_sc[...] = jnp.zeros_like(l_sc)
        acc_sc[...] = jnp.zeros_like(acc_sc)

    q = q_ref[...]                                    # (tq, D), native dtype (bf16)
    k = k_ref[...]                                    # (tk, D)
    v = v_ref[...]                                    # (tk, D)

    # scores (tq, tk) = q @ k^T on the MXU in native dtype, f32 accumulate.
    s = lax.dot_general(
        q, k,
        dimension_numbers=(((1,), (1,)), ((), ())),
        preferred_element_type=jnp.float32,
    )
    s = s * scale                                     # one f32 VPU mul per step

    if mask_kv:  # static: kv axis was padded; mask padded key columns.
        tq, tk = s.shape
        col = kv * block_k + lax.broadcasted_iota(jnp.int32, (tq, tk), 1)
        s = jnp.where(col < n_k, s, -1e30)

    m_prev = m_sc[...]                                # (tq, 1)
    m_new = jnp.maximum(m_prev, s.max(axis=-1, keepdims=True))
    alpha = jnp.exp(m_prev - m_new)
    p = jnp.exp(s - m_new)                            # (tq, tk) f32

    l_sc[...] = alpha * l_sc[...] + p.sum(axis=-1, keepdims=True)
    acc_sc[...] = alpha * acc_sc[...] + jnp.dot(
        p.astype(v.dtype), v, preferred_element_type=jnp.float32)
    m_sc[...] = m_new

    @pl.when(kv == pl.num_programs(2) - 1)
    def _finalize():
        inv_l = pl.reciprocal(l_sc[...], approx=True)
        o_ref[...] = (acc_sc[...] * inv_l).astype(o_ref.dtype)


def attention_forward(q, k, v, *, emb_dim=None, dropout_rate=0.0,
                      block_q=256, block_k=256, compute_dtype=jnp.bfloat16):
    """Attention.forward: softmax(q @ k^T / sqrt(emb_dim)) @ v.

    q: [..., Nq, D]; k, v: [..., Nk, D]. Leading dims are flattened into one
    batch axis for the kernel grid. Returns [..., Nq, D] in q.dtype.
    """
    # TODO(synk): attn_drop is identity here (inference / p == 0); training-mode
    # dropout would draw a mask on `p` via pltpu.prng_seed/prng_random_bits.
    del dropout_rate

    *lead, n_q, d = q.shape
    n_k = k.shape[-2]
    assert k.shape[-1] == d and v.shape[-1] == d and v.shape[-2] == n_k

    out_dtype = q.dtype
    if emb_dim is None:
        emb_dim = d
    scale = 1.0 / (float(emb_dim) ** 0.5)

    batch = 1
    for s in lead:
        batch *= s
    qf = q.reshape(batch, n_q, d)
    kf = k.reshape(batch, n_k, d)
    vf = v.reshape(batch, n_k, d)

    # bf16 matmul operands (f32 accumulation stays in the kernel).
    if compute_dtype is not None:
        qf = qf.astype(compute_dtype)
        kf = kf.astype(compute_dtype)
        vf = vf.astype(compute_dtype)

    # Tile sizes: sublane-aligned q tiles, lane-aligned kv tiles; pad + mask for
    # unaligned lengths instead of a single full-extent tile.
    tq = min(block_q, _round_up(n_q, 8))
    tk = min(block_k, _round_up(n_k, 128))
    n_q_pad = _round_up(n_q, tq)
    n_k_pad = _round_up(n_k, tk)
    if n_q_pad != n_q:
        qf = jnp.pad(qf, ((0, 0), (0, n_q_pad - n_q), (0, 0)))
    if n_k_pad != n_k:
        kf = jnp.pad(kf, ((0, 0), (0, n_k_pad - n_k), (0, 0)))
        vf = jnp.pad(vf, ((0, 0), (0, n_k_pad - n_k), (0, 0)))
    mask_kv = n_k_pad != n_k

    grid = (batch, n_q_pad // tq, n_k_pad // tk)

    kernel = functools.partial(_attn_kernel, scale=scale, n_k=n_k,
                               block_k=tk, mask_kv=mask_kv)

    out = pl.pallas_call(
        kernel,
        out_shape=jax.ShapeDtypeStruct((batch, n_q_pad, d), out_dtype),
        grid_spec=pltpu.PrefetchScalarGridSpec(
            num_scalar_prefetch=0,
            grid=grid,
            in_specs=[
                pl.BlockSpec((pl.Squeezed(), tq, d), lambda b, qi, ki: (b, qi, 0)),  # q
                pl.BlockSpec((pl.Squeezed(), tk, d), lambda b, qi, ki: (b, ki, 0)),  # k
                pl.BlockSpec((pl.Squeezed(), tk, d), lambda b, qi, ki: (b, ki, 0)),  # v
            ],
            out_specs=pl.BlockSpec((pl.Squeezed(), tq, d),
                                   lambda b, qi, ki: (b, qi, 0)),
            scratch_shapes=[
                pltpu.VMEM((tq, 1), jnp.float32),   # running max m
                pltpu.VMEM((tq, 1), jnp.float32),   # running denom l
                pltpu.VMEM((tq, d), jnp.float32),   # f32 output accumulator
            ],
        ),
        compiler_params=pltpu.CompilerParams(
            dimension_semantics=("parallel", "parallel", "arbitrary")),
    )(qf, kf, vf)

    if n_q_pad != n_q:
        out = out[:, :n_q, :]
    return out.reshape(*lead, n_q, d)


if __name__ == "__main__":
    # Small multi-head-attention-shaped inputs, tile-aligned for the TPU:
    # batch=2, heads=2, seq=256, head_dim=128 (emb_dim used for the 1/sqrt scale).
    B, H, N, D = 2, 2, 256, 128

    key = jax.random.PRNGKey(0)
    kq, kk, kv_ = jax.random.split(key, 3)
    q = jax.random.normal(kq, (B, H, N, D), dtype=jnp.float32)
    k = jax.random.normal(kk, (B, H, N, D), dtype=jnp.float32)
    v = jax.random.normal(kv_, (B, H, N, D), dtype=jnp.float32)

    out = attention_forward(q, k, v, emb_dim=D)
    out = jax.block_until_ready(out)

    # Plain-JAX f32 reference (matches the PyTorch module, eval-mode dropout).
    sqrt_dh = float(D) ** 0.5
    dots = jnp.einsum("bhqd,bhkd->bhqk", q, k) / sqrt_dh
    attn = jax.nn.softmax(dots, axis=-1)
    ref = jnp.einsum("bhqk,bhkd->bhqd", attn, v)

    assert out.shape == ref.shape, (out.shape, ref.shape)
    # bf16 matmul operands (f32 accumulation) -> ~1e-2-scale deviation vs f32 ref.
    assert jnp.allclose(out, ref, atol=3e-2, rtol=3e-2), float(
        jnp.max(jnp.abs(out - ref)))

    print("KERNEL_OK")
</pallas_src>

<mosaic_0001>
module attributes {stable_mosaic.version = 11 : i64} {
  func.func @_attn_kernel(%arg0: i32, %arg1: i32, %arg2: i32, %arg3: memref<1x256x128xbf16, #tpu.memory_space<vmem>>, %arg4: memref<1x256x128xbf16, #tpu.memory_space<vmem>>, %arg5: memref<1x256x128xbf16, #tpu.memory_space<vmem>>, %arg6: memref<1x256x128xf32, #tpu.memory_space<vmem>>, %arg7: memref<256x1xf32, #tpu.memory_space<vmem>>, %arg8: memref<256x1xf32, #tpu.memory_space<vmem>>, %arg9: memref<256x128xf32, #tpu.memory_space<vmem>>) attributes {dimension_semantics = [#tpu.dimension_semantics<parallel>, #tpu.dimension_semantics<parallel>, #tpu.dimension_semantics<arbitrary>], iteration_bounds = array<i64: 4, 1, 1>, scalar_prefetch = 0 : i64, scratch_operands = 3 : i64, tpu.core_type = #tpu.core_type<tc>, window_params = [{transform_indices = @transform_0, window_bounds = array<i64: 1, 256, 128>}, {transform_indices = @transform_1, window_bounds = array<i64: 1, 256, 128>}, {transform_indices = @transform_2, window_bounds = array<i64: 1, 256, 128>}, {transform_indices = @transform_3, window_bounds = array<i64: 1, 256, 128>}]} {
    %c0_i32 = arith.constant 0 : i32
    %0 = arith.cmpi eq, %arg2, %c0_i32 : i32
    %1 = arith.extui %0 : i1 to i32
    %c0_i32_0 = arith.constant 0 : i32
    %2 = arith.cmpi ne, %1, %c0_i32_0 : i32
    scf.if %2 {
      %cst_27 = arith.constant 0xFF800000 : f32
      %38 = vector.broadcast %cst_27 : f32 to vector<256x1xf32>
      %c0_28 = arith.constant 0 : index
      %c0_29 = arith.constant 0 : index
      %39 = vector.load %arg7[%c0_28, %c0_29] : memref<256x1xf32, #tpu.memory_space<vmem>>, vector<256x1xf32>
      tpu.vector_store %arg7[%c0_28, %c0_29], %38 {strides = array<i32>} : memref<256x1xf32, #tpu.memory_space<vmem>>, vector<256x1xf32>,
      %cst_30 = arith.constant 0.000000e+00 : f32
      %40 = vector.broadcast %cst_30 : f32 to vector<256x1xf32>
      %c0_31 = arith.constant 0 : index
      %c0_32 = arith.constant 0 : index
      %41 = vector.load %arg8[%c0_31, %c0_32] : memref<256x1xf32, #tpu.memory_space<vmem>>, vector<256x1xf32>
      tpu.vector_store %arg8[%c0_31, %c0_32], %40 {strides = array<i32>} : memref<256x1xf32, #tpu.memory_space<vmem>>, vector<256x1xf32>,
      %cst_33 = arith.constant 0.000000e+00 : f32
      %42 = vector.broadcast %cst_33 : f32 to vector<256x128xf32>
      %c0_34 = arith.constant 0 : index
      %c0_35 = arith.constant 0 : index
      %43 = vector.load %arg9[%c0_34, %c0_35] : memref<256x128xf32, #tpu.memory_space<vmem>>, vector<256x128xf32>
      tpu.vector_store %arg9[%c0_34, %c0_35], %42 {strides = array<i32>} : memref<256x128xf32, #tpu.memory_space<vmem>>, vector<256x128xf32>,
    } else {
    }
    %c0 = arith.constant 0 : index
    %c0_1 = arith.constant 0 : index
    %c0_2 = arith.constant 0 : index
    %3 = vector.load %arg3[%c0, %c0_1, %c0_2] : memref<1x256x128xbf16, #tpu.memory_space<vmem>>, vector<1x256x128xbf16>
    %4 = vector.shape_cast %3 : vector<1x256x128xbf16> to vector<256x128xbf16>
    %c0_3 = arith.constant 0 : index
    %c0_4 = arith.constant 0 : index
    %c0_5 = arith.constant 0 : index
    %5 = vector.load %arg4[%c0_3, %c0_4, %c0_5] : memref<1x256x128xbf16, #tpu.memory_space<vmem>>, vector<1x256x128xbf16>
    %6 = vector.shape_cast %5 : vector<1x256x128xbf16> to vector<256x128xbf16>
    %c0_6 = arith.constant 0 : index
    %c0_7 = arith.constant 0 : index
    %c0_8 = arith.constant 0 : index
    %7 = vector.load %arg5[%c0_6, %c0_7, %c0_8] : memref<1x256x128xbf16, #tpu.memory_space<vmem>>, vector<1x256x128xbf16>
    %8 = vector.shape_cast %7 : vector<1x256x128xbf16> to vector<256x128xbf16>
    %cst = arith.constant dense<0.000000e+00> : vector<256x256xf32>
    %9 = tpu.matmul %4, %6, %cst {dimension_numbers = #tpu.dot_dimension_numbers<[1], [1], [0], [0], [0, 0, 1, 0], [], []>} : vector<256x128xbf16>, vector<256x128xbf16>, vector<256x256xf32> -> vector<256x256xf32>
    %cst_9 = arith.constant 0.0883883461 : f32
    %10 = vector.broadcast %cst_9 : f32 to vector<256x256xf32>
    %11 = arith.mulf %9, %10 : vector<256x256xf32>
    %c0_10 = arith.constant 0 : index
    %c0_11 = arith.constant 0 : index
    %12 = vector.load %arg7[%c0_10, %c0_11] : memref<256x1xf32, #tpu.memory_space<vmem>>, vector<256x1xf32>
    %cst_12 = arith.constant dense<0xFF800000> : vector<256xf32>
    %13 = vector.multi_reduction <maximumf>, %11, %cst_12 [1] : vector<256x256xf32> to vector<256xf32>
    %14 = vector.shape_cast %13 : vector<256xf32> to vector<256x1xf32>
    %15 = arith.maximumf %12, %14 : vector<256x1xf32>
    %16 = arith.subf %12, %15 : vector<256x1xf32>
    %17 = math.exp %16 : vector<256x1xf32>
    %18 = vector.broadcast %15 : vector<256x1xf32> to vector<256x256xf32>
    %19 = arith.subf %11, %18 : vector<256x256xf32>
    %20 = math.exp %19 : vector<256x256xf32>
    %c0_13 = arith.constant 0 : index
    %c0_14 = arith.constant 0 : index
    %21 = vector.load %arg8[%c0_13, %c0_14] : memref<256x1xf32, #tpu.memory_space<vmem>>, vector<256x1xf32>
    %22 = arith.mulf %17, %21 : vector<256x1xf32>
    %cst_15 = arith.constant dense<0.000000e+00> : vector<256xf32>
    %23 = vector.multi_reduction <add>, %20, %cst_15 [1] : vector<256x256xf32> to vector<256xf32>
    %24 = vector.shape_cast %23 : vector<256xf32> to vector<256x1xf32>
    %25 = arith.addf %22, %24 : vector<256x1xf32>
    %c0_16 = arith.constant 0 : index
    %c0_17 = arith.constant 0 : index
    %26 = vector.load %arg8[%c0_16, %c0_17] : memref<256x1xf32, #tpu.memory_space<vmem>>, vector<256x1xf32>
    tpu.vector_store %arg8[%c0_16, %c0_17], %25 {strides = array<i32>} : memref<256x1xf32, #tpu.memory_space<vmem>>, vector<256x1xf32>,
    %c0_18 = arith.constant 0 : index
    %c0_19 = arith.constant 0 : index
    %27 = vector.load %arg9[%c0_18, %c0_19] : memref<256x128xf32, #tpu.memory_space<vmem>>, vector<256x128xf32>
    %28 = vector.broadcast %17 : vector<256x1xf32> to vector<256x128xf32>
    %29 = arith.mulf %28, %27 : vector<256x128xf32>
    %30 = arith.truncf %20 : vector<256x256xf32> to vector<256x256xbf16>
    %cst_20 = arith.constant dense<0.000000e+00> : vector<256x128xf32>
    %31 = tpu.matmul %30, %8, %cst_20 {dimension_numbers = #tpu.dot_dimension_numbers<[1], [0], [0], [1], [0, 0, 1, 1], [], []>} : vector<256x256xbf16>, vector<256x128xbf16>, vector<256x128xf32> -> vector<256x128xf32>
    %32 = arith.addf %29, %31 : vector<256x128xf32>
    %c0_21 = arith.constant 0 : index
    %c0_22 = arith.constant 0 : index
    %33 = vector.load %arg9[%c0_21, %c0_22] : memref<256x128xf32, #tpu.memory_space<vmem>>, vector<256x128xf32>
    tpu.vector_store %arg9[%c0_21, %c0_22], %32 {strides = array<i32>} : memref<256x128xf32, #tpu.memory_space<vmem>>, vector<256x128xf32>,
    %c0_23 = arith.constant 0 : index
    %c0_24 = arith.constant 0 : index
    %34 = vector.load %arg7[%c0_23, %c0_24] : memref<256x1xf32, #tpu.memory_space<vmem>>, vector<256x1xf32>
    tpu.vector_store %arg7[%c0_23, %c0_24], %15 {strides = array<i32>} : memref<256x1xf32, #tpu.memory_space<vmem>>, vector<256x1xf32>,
    %c0_i32_25 = arith.constant 0 : i32
    %35 = arith.cmpi eq, %arg2, %c0_i32_25 : i32
    %36 = arith.extui %35 : i1 to i32
    %c0_i32_26 = arith.constant 0 : i32
    %37 = arith.cmpi ne, %36, %c0_i32_26 : i32
    scf.if %37 {
      %c0_27 = arith.constant 0 : index
      %c0_28 = arith.constant 0 : index
      %38 = vector.load %arg8[%c0_27, %c0_28] : memref<256x1xf32, #tpu.memory_space<vmem>>, vector<256x1xf32>
      %39 = tpu.reciprocal %38 {approx = true} : vector<256x1xf32> -> vector<256x1xf32>
      %c0_29 = arith.constant 0 : index
      %c0_30 = arith.constant 0 : index
      %40 = vector.load %arg9[%c0_29, %c0_30] : memref<256x128xf32, #tpu.memory_space<vmem>>, vector<256x128xf32>
      %41 = vector.broadcast %39 : vector<256x1xf32> to vector<256x128xf32>
      %42 = arith.mulf %40, %41 : vector<256x128xf32>
      %c0_31 = arith.constant 0 : index
      %c0_32 = arith.constant 0 : index
      %c0_33 = arith.constant 0 : index
      %43 = vector.load %arg6[%c0_31, %c0_32, %c0_33] : memref<1x256x128xf32, #tpu.memory_space<vmem>>, vector<1x256x128xf32>
      %44 = vector.shape_cast %43 : vector<1x256x128xf32> to vector<256x128xf32>
      %45 = vector.shape_cast %42 : vector<256x128xf32> to vector<1x256x128xf32>
      tpu.vector_store %arg6[%c0_31, %c0_32, %c0_33], %45 {strides = array<i32>} : memref<1x256x128xf32, #tpu.memory_space<vmem>>, vector<1x256x128xf32>,
    } else {
    }
    return
  }
  func.func @transform_0(%arg0: i32, %arg1: i32, %arg2: i32) -> (i32, i32, i32) {
    %c0_i32 = arith.constant 0 : i32
    %c0_i32_0 = arith.constant 0 : i32
    return %arg0, %arg1, %c0_i32 : i32, i32, i32
  }
  func.func @transform_1(%arg0: i32, %arg1: i32, %arg2: i32) -> (i32, i32, i32) {
    %c0_i32 = arith.constant 0 : i32
    %c0_i32_0 = arith.constant 0 : i32
    return %arg0, %arg2, %c0_i32 : i32, i32, i32
  }
  func.func @transform_2(%arg0: i32, %arg1: i32, %arg2: i32) -> (i32, i32, i32) {
    %c0_i32 = arith.constant 0 : i32
    %c0_i32_0 = arith.constant 0 : i32
    return %arg0, %arg2, %c0_i32 : i32, i32, i32
  }
  func.func @transform_3(%arg0: i32, %arg1: i32, %arg2: i32) -> (i32, i32, i32) {
    %c0_i32 = arith.constant 0 : i32
    %c0_i32_0 = arith.constant 0 : i32
    return %arg0, %arg1, %c0_i32 : i32, i32, i32
  }
}

</mosaic_0001>

<llo_original>
// kernel: tpu_custom_call.1
$region0: #{tpu_custom_call.1}
  #allocation0 [shape = 'u32[]', space=smem, size = 0x4, offset = 0x4, fixed_abs, tag = 'smem constant byte address 0x4 - core index']
  #allocation1 [shape = 'u32[144,128]{1,0:T(1,128)}', space=vmem, size = 0x12000, scoped, tag = 'internal scratch']
  #allocation2 [shape = 'f32[256,1]{1,0:T(8,128)}', space=vmem, size = 0x20000, scoped, tag = 'scratch operand']
  #allocation3 [shape = 'f32[256,1]{1,0:T(8,128)}', space=vmem, size = 0x20000, scoped, tag = 'scratch operand']
  #allocation4 [shape = 'f32[256,128]{1,0:T(8,128)}', space=vmem, size = 0x20000, scoped, tag = 'scratch operand']
  %s0 = inlined_call_operand.hbm [shape: bf16[4,256,128], index: 0, kind: input, shape index: {}]
  %s1 = inlined_call_operand.hbm [shape: bf16[4,256,128], index: 1, kind: input, shape index: {}]
  %s2 = inlined_call_operand.hbm [shape: bf16[4,256,128], index: 2, kind: input, shape index: {}]
  %s3 = inlined_call_operand.hbm [shape: f32[4,256,128], index: 3, kind: output, shape index: {}]
  %s4 = sld [smem:[#allocation0]]
  $region65: #{tpu_custom_call.1} parent=0
    _
  %s6 = ssub.s32 1, %s4
  %s7 = scalar_select 0, %s6, %s4
  $region1: #{tpu_custom_call.1} parent=0
    #allocation5 [shape = 'u8[131072]{0}', space=vmem, size = 0x20000, scoped, tag = 'input window, operand 0']
    #allocation6 [shape = 's32[2]{0}', space=sflag, size = 0x8, scoped, tag = 'scoped memory for tpu_custom_call.1']
    #allocation7 [shape = 's32[2]{0}', space=sflag, size = 0x8, scoped, tag = 'scoped memory for tpu_custom_call.1']
    #allocation8 [shape = 'u8[131072]{0}', space=vmem, size = 0x20000, scoped, tag = 'input window, operand 1']
    #allocation9 [shape = 's32[2]{0}', space=sflag, size = 0x8, scoped, tag = 'scoped memory for tpu_custom_call.1']
    #allocation10 [shape = 'u8[131072]{0}', space=vmem, size = 0x20000, scoped, tag = 'input window, operand 2']
    #allocation11 [shape = 'u8[262144]{0}', space=vmem, size = 0x40000, scoped, tag = 'output window, operand 0']
    %8 = vsyncpa [#allocation6], 0
    %s9 = scalar_lea.sflag [#allocation6], 1
    %10 = vsyncpa %s9, 0
    %11 = vsyncpa [#allocation9], 0
    %s12 = scalar_lea.sflag [#allocation9], 1
    %13 = vsyncpa %s12, 0
    %14 = vsyncpa [#allocation7], 0
    %s15 = scalar_lea.sflag [#allocation7], 1
    %16 = vsyncpa %s15, 0
    loop: start=0, step=1, limit=6
    $region2: #{tpu_custom_call.1} parent=1 // loop_pre_header
      _
    $region3: #{tpu_custom_call.1} parent=1 // loop_header
      %s18 = sphi 0, %s22
      %p19 = scmp.ge.s32.totalorder %s18, 6
      %s25 = sphi 0, %s44
      %s26 = sphi 0, %s40
      %s27 = sphi 0, %s36
      %s28 = sphi 0, %s25
      %s29 = sphi 0, %s26
      %s30 = sphi 0, %s27
      %s31 = sphi 0, %s28
      %s32 = sphi 0, %s29
      %s33 = sphi 0, %s30
      %s49 = sphi 0, %s51
      %s52 = sphi 0, %s49
      %s53 = sphi 0, %s52
      %s69 = sphi 0, %s53
      %s77 = sphi 0, %s79
      %s80 = sphi 0, %s77
      %s81 = sphi 0, %s80
      %s97 = sphi 0, %s81
      %s105 = sphi 0, %s107
      %s108 = sphi 0, %s105
      %s109 = sphi 0, %s108
      %s125 = sphi 0, %s109
      %s133 = sphi 0, %s135
      %s136 = sphi 0, %s133
      %s137 = sphi 0, %s136
      %s153 = sphi 0, %s137
    $region4: #{tpu_custom_call.1} parent=1 // loop_header_branch
      %21 = sbr.rel (%p19) target = $region8
    $region5: #{tpu_custom_call.1} parent=1 // loop_body
      %s23 = ssub.s32 %s18, 1
      %s24 = ssub.s32 %s18, 2
      %s34 = sadd.s32 1, %s27
      %p35 = scmp.ge.s32.totalorder %s34, 1
      %s36 = scalar_select %p35, 0, %s34
      %s37 = sadd.s32 1, %s26
      %s38 = scalar_select %p35, %s37, %s26
      %p39 = scmp.ge.s32.totalorder %s38, 1
      %s40 = scalar_select %p39, 0, %s38
      %s41 = sadd.s32 1, %s25
      %s42 = scalar_select %p39, %s41, %s25
      %p43 = scmp.ge.s32.totalorder %s42, 4
      %s44 = scalar_select %p43, 0, %s42
      %s45 = ssub.s32 %s25, %s44
      %s46 = ssub.s32 %s26, %s40
      %s47 = sor.u32 %s45, %s46
      %p48 = scmp.eq.s32.totalorder %s47, 0
      %s50 = sadd.s32 %s49, 1
      %s51 = scalar_select %p48, %s49, %s50
      %p54 = pneg %p48
      %p55 = scmp.eq.s32.totalorder %s18, 3
      %p56 = por %p54, %p55
      %p57 = scmp.ne.s32.totalorder %s49, %s52
      %p58 = scmp.eq.s32.totalorder %s18, 0
      %p59 = por %p57, %p58
      %p60 = scmp.ne.s32.totalorder %s49, %s52
      %p61 = scmp.eq.s32.totalorder %s23, 3
      %p62 = por %p60, %p61
      %p63 = scmp.ne.s32.totalorder %s52, %s53
      %p64 = scmp.eq.s32.totalorder %s23, 0
      %p65 = por %p63, %p64
      %p66 = scmp.ne.s32.totalorder %s52, %s53
      %p67 = scmp.eq.s32.totalorder %s24, 3
      %p68 = por %p66, %p67
      %p70 = scmp.ne.s32.totalorder %s53, %s69
      %p71 = scmp.eq.s32.totalorder %s24, 0
      %p72 = por %p70, %p71
      %s73 = ssub.s32 %s25, %s44
      %s74 = ssub.s32 %s27, %s36
      %s75 = sor.u32 %s73, %s74
      %p76 = scmp.eq.s32.totalorder %s75, 0
      %s78 = sadd.s32 %s77, 1
      %s79 = scalar_select %p76, %s77, %s78
      %p82 = pneg %p76
      %p83 = scmp.eq.s32.totalorder %s18, 3
      %p84 = por %p82, %p83
      %p85 = scmp.ne.s32.totalorder %s77, %s80
      %p86 = scmp.eq.s32.totalorder %s18, 0
      %p87 = por %p85, %p86
      %p88 = scmp.ne.s32.totalorder %s77, %s80
      %p89 = scmp.eq.s32.totalorder %s23, 3
      %p90 = por %p88, %p89
      %p91 = scmp.ne.s32.totalorder %s80, %s81
      %p92 = scmp.eq.s32.totalorder %s23, 0
      %p93 = por %p91, %p92
      %p94 = scmp.ne.s32.totalorder %s80, %s81
      %p95 = scmp.eq.s32.totalorder %s24, 3
      %p96 = por %p94, %p95
      %p98 = scmp.ne.s32.totalorder %s81, %s97
      %p99 = scmp.eq.s32.totalorder %s24, 0
      %p100 = por %p98, %p99
      %s101 = ssub.s32 %s25, %s44
      %s102 = ssub.s32 %s27, %s36
      %s103 = sor.u32 %s101, %s102
      %p104 = scmp.eq.s32.totalorder %s103, 0
      %s106 = sadd.s32 %s105, 1
      %s107 = scalar_select %p104, %s105, %s106
      %p110 = pneg %p104
      %p111 = scmp.eq.s32.totalorder %s18, 3
      %p112 = por %p110, %p111
      %p113 = scmp.ne.s32.totalorder %s105, %s108
      %p114 = scmp.eq.s32.totalorder %s18, 0
      %p115 = por %p113, %p114
      %p116 = scmp.ne.s32.totalorder %s105, %s108
      %p117 = scmp.eq.s32.totalorder %s23, 3
      %p118 = por %p116, %p117
      %p119 = scmp.ne.s32.totalorder %s108, %s109
      %p120 = scmp.eq.s32.totalorder %s23, 0
      %p121 = por %p119, %p120
      %p122 = scmp.ne.s32.totalorder %s108, %s109
      %p123 = scmp.eq.s32.totalorder %s24, 3
      %p124 = por %p122, %p123
      %p126 = scmp.ne.s32.totalorder %s109, %s125
      %p127 = scmp.eq.s32.totalorder %s24, 0
      %p128 = por %p126, %p127
      %s129 = ssub.s32 %s25, %s44
      %s130 = ssub.s32 %s26, %s40
      %s131 = sor.u32 %s129, %s130
      %p132 = scmp.eq.s32.totalorder %s131, 0
      %s134 = sadd.s32 %s133, 1
      %s135 = scalar_select %p132, %s133, %s134
      %p138 = pneg %p132
      %p139 = scmp.eq.s32.totalorder %s18, 3
      %p140 = por %p138, %p139
      %p141 = scmp.ne.s32.totalorder %s133, %s136
      %p142 = scmp.eq.s32.totalorder %s18, 0
      %p143 = por %p141, %p142
      %p144 = scmp.ne.s32.totalorder %s133, %s136
      %p145 = scmp.eq.s32.totalorder %s23, 3
      %p146 = por %p144, %p145
      %p147 = scmp.ne.s32.totalorder %s136, %s137
      %p148 = scmp.eq.s32.totalorder %s23, 0
      %p149 = por %p147, %p148
      %p150 = scmp.ne.s32.totalorder %s136, %s137
      %p151 = scmp.eq.s32.totalorder %s24, 3
      %p152 = por %p150, %p151
      %p154 = scmp.ne.s32.totalorder %s137, %s153
      %p155 = scmp.eq.s32.totalorder %s24, 0
      %p156 = por %p154, %p155
      %p157 = scmp.le.s32.totalorder 1, %s18
      %p158 = scmp.lt.s32.totalorder %s18, 5
      %p159 = pnand %p157, %p158
      %p160 = pneg %p159
      // Predicated region
      $region9: #{tpu_custom_call.1} parent=5 // pred_check
        _
      $region10: #{tpu_custom_call.1} parent=5 // pred_check_branch
        %162 = sbr.rel (%p159) target = $region12
      $region11: #{tpu_custom_call.1} parent=5 // pred_region
        %s163 = ssub.s32 %s18, 1
      $region12: #{tpu_custom_call.1} parent=5 // pred_fallthru
        _
      %p164 = scmp.lt.s32.totalorder %s18, 4
      // Predicated region
      $region13: #{tpu_custom_call.1} parent=5 // pred_check
        %p165 = pneg %p164
      $region14: #{tpu_custom_call.1} parent=5 // pred_check_branch
        %167 = sbr.rel (%p165) target = $region16
      $region15: #{tpu_custom_call.1} parent=5 // pred_region
        // Predicated region
        $region17: #{tpu_custom_call.1} parent=15 // pred_check
          %p168 = pneg %p59
        $region18: #{tpu_custom_call.1} parent=15 // pred_check_branch
          %170 = sbr.rel (%p168) target = $region20
        $region19: #{tpu_custom_call.1} parent=15 // pred_region
          %s171 = sand.u32 %s49, 1
          %s172 = scalar_lea.sflag [#allocation6], %s171
          %s173 = sand.u32 %s49, 1
          %s174 = smul.addr %s173, 128
          %s175 = scalar_lea.vmem [#allocation5], %s174
          %s176 = smul.u32 32, %s26
          %s178 = ssub.s32 2048, 2048
          %179 = vsyncadd %s172, %s178
          %s180 = smul.addr %s25, 32
          %s181 = sadd.s32 %s176, %s180
          %s182 = smul.addr %s181, 64
          %s183 = scalar_lea.hbm %s0, %s182
          %s184 = sshll.u32 %s175, 4
          %s185 = int_to_ptr.vmem [resolvable:$true] %s184
          %190 = dma.hbm_to_vmem [thread:$0]  %s183, 2048, %s185, %s172, 64, 64, 4
        $region20: #{tpu_custom_call.1} parent=15 // pred_fallthru
          _
        // Predicated region
        $region21: #{tpu_custom_call.1} parent=15 // pred_check
          %p191 = pneg %p87
        $region22: #{tpu_custom_call.1} parent=15 // pred_check_branch
          %193 = sbr.rel (%p191) target = $region24
        $region23: #{tpu_custom_call.1} parent=15 // pred_region
          %s194 = sand.u32 %s18, 1
          %s195 = scalar_lea.sflag [#allocation9], %s194
          %s196 = sand.u32 %s77, 1
          %s197 = smul.addr %s196, 128
          %s198 = scalar_lea.vmem [#allocation8], %s197
          %s199 = smul.u32 32, %s27
          %s201 = ssub.s32 2048, 2048
          %202 = vsyncadd %s195, %s201
          %s203 = smul.addr %s25, 32
          %s204 = sadd.s32 %s199, %s203
          %s205 = smul.addr %s204, 64
          %s206 = scalar_lea.hbm %s1, %s205
          %s207 = sshll.u32 %s198, 4
          %s208 = int_to_ptr.vmem [resolvable:$true] %s207
          %213 = dma.hbm_to_vmem [thread:$0]  %s206, 2048, %s208, %s195, 64, 64, 4
        $region24: #{tpu_custom_call.1} parent=15 // pred_fallthru
          _
        // Predicated region
        $region25: #{tpu_custom_call.1} parent=15 // pred_check
          %p214 = pneg %p115
        $region26: #{tpu_custom_call.1} parent=15 // pred_check_branch
          %216 = sbr.rel (%p214) target = $region28
        $region27: #{tpu_custom_call.1} parent=15 // pred_region
          %s217 = sand.u32 %s18, 1
          %s218 = scalar_lea.sflag [#allocation9], %s217
          %s219 = sand.u32 %s105, 1
          %s220 = smul.addr %s219, 128
          %s221 = scalar_lea.vmem [#allocation10], %s220
          %s222 = smul.u32 32, %s27
          %s224 = ssub.s32 2048, 2048
          %225 = vsyncadd %s218, %s224
          %s226 = smul.addr %s25, 32
          %s227 = sadd.s32 %s222, %s226
          %s228 = smul.addr %s227, 64
          %s229 = scalar_lea.hbm %s2, %s228
          %s230 = sshll.u32 %s221, 4
          %s231 = int_to_ptr.vmem [resolvable:$true] %s230
          %236 = dma.hbm_to_vmem [thread:$0]  %s229, 2048, %s231, %s218, 64, 64, 4
        $region28: #{tpu_custom_call.1} parent=15 // pred_fallthru
          _
      $region16: #{tpu_custom_call.1} parent=5 // pred_fallthru
        _
      %p237 = scmp.le.s32.totalorder 1, %s18
      %p238 = scmp.lt.s32.totalorder %s18, 5
      %p239 = pnand %p237, %p238
      %p240 = pneg %p239
      // Predicated region
      $region29: #{tpu_custom_call.1} parent=5 // pred_check
        _
      $region30: #{tpu_custom_call.1} parent=5 // pred_check_branch
        %242 = sbr.rel (%p239) target = $region32
      $region31: #{tpu_custom_call.1} parent=5 // pred_region
        %s243 = ssub.s32 %s18, 1
        %s244 = sand.u32 %s52, 1
        %s245 = scalar_lea.sflag [#allocation6], %s244
        %s246 = sand.u32 %s52, 1
        %s247 = smul.addr %s246, 128
        %s248 = scalar_lea.vmem [#allocation5], %s247
        // Predicated region
        $region33: #{tpu_custom_call.1} parent=31 // pred_check
          %p249 = pneg %p65
        $region34: #{tpu_custom_call.1} parent=31 // pred_check_branch
          %251 = sbr.rel (%p249) target = $region36
        $region35: #{tpu_custom_call.1} parent=31 // pred_region
          %252 = dma.done %s245, 2048
        $region36: #{tpu_custom_call.1} parent=31 // pred_fallthru
          _
        %s253 = sand.u32 %s23, 1
        %s254 = scalar_lea.sflag [#allocation9], %s253
        %s255 = sand.u32 %s80, 1
        %s256 = smul.addr %s255, 128
        %s257 = scalar_lea.vmem [#allocation8], %s256
        // Predicated region
        $region37: #{tpu_custom_call.1} parent=31 // pred_check
          %p258 = pneg %p93
        $region38: #{tpu_custom_call.1} parent=31 // pred_check_branch
          %260 = sbr.rel (%p258) target = $region40
        $region39: #{tpu_custom_call.1} parent=31 // pred_region
          %261 = dma.done %s254, 2048
        $region40: #{tpu_custom_call.1} parent=31 // pred_fallthru
          _
        %s262 = sand.u32 %s23, 1
        %s263 = scalar_lea.sflag [#allocation9], %s262
        %s264 = sand.u32 %s108, 1
        %s265 = smul.addr %s264, 128
        %s266 = scalar_lea.vmem [#allocation10], %s265
        // Predicated region
        $region41: #{tpu_custom_call.1} parent=31 // pred_check
          %p267 = pneg %p121
        $region42: #{tpu_custom_call.1} parent=31 // pred_check_branch
          %269 = sbr.rel (%p267) target = $region44
        $region43: #{tpu_custom_call.1} parent=31 // pred_region
          %270 = dma.done %s263, 2048
        $region44: #{tpu_custom_call.1} parent=31 // pred_fallthru
          _
        %s271 = sand.u32 %s52, 1
        %s272 = scalar_lea.sflag [#allocation6], %s271
        %s273 = sand.u32 %s52, 1
        %s274 = smul.addr %s273, 128
        %s275 = scalar_lea.vmem [#allocation5], %s274
        %p276 = pneg %p65
        %p277 = pneg %p62
        %s278 = sand.u32 %s23, 1
        %s279 = scalar_lea.sflag [#allocation9], %s278
        %s280 = sand.u32 %s80, 1
        %s281 = smul.addr %s280, 128
        %s282 = scalar_lea.vmem [#allocation8], %s281
        %p283 = pneg %p93
        %p284 = pneg %p90
        %s285 = sand.u32 %s23, 1
        %s286 = scalar_lea.sflag [#allocation9], %s285
        %s287 = sand.u32 %s108, 1
        %s288 = smul.addr %s287, 128
        %s289 = scalar_lea.vmem [#allocation10], %s288
        %p290 = pneg %p121
        %p291 = pneg %p118
        %p292 = pneg %p149
        %p293 = pneg %p146
        %s294 = sand.u32 %s136, 1
        %s295 = scalar_lea.sflag [#allocation7], %s294
        %s296 = sand.u32 %s136, 1
        %s297 = smul.addr %s296, 256
        %s298 = scalar_lea.vmem [#allocation11], %s297
        %s299 = smul.u32 32, %s29
        %s300 = smul.u32 32, %s30
        %s301 = smul.u32 32, %s30
        %s302 = smul.u32 32, %s29
        %p304 = scmp.eq.s32.totalorder %s30, 0
        // Predicated region
        $region45: #{tpu_custom_call.1} parent=31 // pred_check
          %p305 = pneg %p304
        $region46: #{tpu_custom_call.1} parent=31 // pred_check_branch
          %307 = sbr.rel (%p305) target = $region48
        $region47: #{tpu_custom_call.1} parent=31 // pred_region
          %vm308 = vcmask 7168
          %309 = vst.msk [vmem:[#allocation2] sm:$0xff] %vm308, -inf
          %310 = vst.msk [vmem:[#allocation2 + $0x8] sm:$0xff] %vm308, -inf
          %311 = vst.msk [vmem:[#allocation2 + $0x10] sm:$0xff] %vm308, -inf
          %312 = vst.msk [vmem:[#allocation2 + $0x18] sm:$0xff] %vm308, -inf
          %313 = vst.msk [vmem:[#allocation2 + $0x20] sm:$0xff] %vm308, -inf
          %314 = vst.msk [vmem:[#allocation2 + $0x28] sm:$0xff] %vm308, -inf
          %315 = vst.msk [vmem:[#allocation2 + $0x30] sm:$0xff] %vm308, -inf
          %316 = vst.msk [vmem:[#allocation2 + $0x38] sm:$0xff] %vm308, -inf
          %317 = vst.msk [vmem:[#allocation2 + $0x40] sm:$0xff] %vm308, -inf
          %318 = vst.msk [vmem:[#allocation2 + $0x48] sm:$0xff] %vm308, -inf
          %319 = vst.msk [vmem:[#allocation2 + $0x50] sm:$0xff] %vm308, -inf
          %320 = vst.msk [vmem:[#allocation2 + $0x58] sm:$0xff] %vm308, -inf
          %321 = vst.msk [vmem:[#allocation2 + $0x60] sm:$0xff] %vm308, -inf
          %322 = vst.msk [vmem:[#allocation2 + $0x68] sm:$0xff] %vm308, -inf
          %323 = vst.msk [vmem:[#allocation2 + $0x70] sm:$0xff] %vm308, -inf
          %324 = vst.msk [vmem:[#allocation2 + $0x78] sm:$0xff] %vm308, -inf
          %325 = vst.msk [vmem:[#allocation2 + $0x80] sm:$0xff] %vm308, -inf
          %326 = vst.msk [vmem:[#allocation2 + $0x88] sm:$0xff] %vm308, -inf
          %327 = vst.msk [vmem:[#allocation2 + $0x90] sm:$0xff] %vm308, -inf
          %328 = vst.msk [vmem:[#allocation2 + $0x98] sm:$0xff] %vm308, -inf
          %329 = vst.msk [vmem:[#allocation2 + $0xa0] sm:$0xff] %vm308, -inf
          %330 = vst.msk [vmem:[#allocation2 + $0xa8] sm:$0xff] %vm308, -inf
          %331 = vst.msk [vmem:[#allocation2 + $0xb0] sm:$0xff] %vm308, -inf
          %332 = vst.msk [vmem:[#allocation2 + $0xb8] sm:$0xff] %vm308, -inf
          %333 = vst.msk [vmem:[#allocation2 + $0xc0] sm:$0xff] %vm308, -inf
          %334 = vst.msk [vmem:[#allocation2 + $0xc8] sm:$0xff] %vm308, -inf
          %335 = vst.msk [vmem:[#allocation2 + $0xd0] sm:$0xff] %vm308, -inf
          %336 = vst.msk [vmem:[#allocation2 + $0xd8] sm:$0xff] %vm308, -inf
          %337 = vst.msk [vmem:[#allocation2 + $0xe0] sm:$0xff] %vm308, -inf
          %338 = vst.msk [vmem:[#allocation2 + $0xe8] sm:$0xff] %vm308, -inf
          %339 = vst.msk [vmem:[#allocation2 + $0xf0] sm:$0xff] %vm308, -inf
          %340 = vst.msk [vmem:[#allocation2 + $0xf8] sm:$0xff] %vm308, -inf
          %341 = vst.msk [vmem:[#allocation3] sm:$0xff] %vm308, 0.0
          %342 = vst.msk [vmem:[#allocation3 + $0x8] sm:$0xff] %vm308, 0.0
          %343 = vst.msk [vmem:[#allocation3 + $0x10] sm:$0xff] %vm308, 0.0
          %344 = vst.msk [vmem:[#allocation3 + $0x18] sm:$0xff] %vm308, 0.0
          %345 = vst.msk [vmem:[#allocation3 + $0x20] sm:$0xff] %vm308, 0.0
          %346 = vst.msk [vmem:[#allocation3 + $0x28] sm:$0xff] %vm308, 0.0
          %347 = vst.msk [vmem:[#allocation3 + $0x30] sm:$0xff] %vm308, 0.0
          %348 = vst.msk [vmem:[#allocation3 + $0x38] sm:$0xff] %vm308, 0.0
          %349 = vst.msk [vmem:[#allocation3 + $0x40] sm:$0xff] %vm308, 0.0
          %350 = vst.msk [vmem:[#allocation3 + $0x48] sm:$0xff] %vm308, 0.0
          %351 = vst.msk [vmem:[#allocation3 + $0x50] sm:$0xff] %vm308, 0.0
          %352 = vst.msk [vmem:[#allocation3 + $0x58] sm:$0xff] %vm308, 0.0
          %353 = vst.msk [vmem:[#allocation3 + $0x60] sm:$0xff] %vm308, 0.0
          %354 = vst.msk [vmem:[#allocation3 + $0x68] sm:$0xff] %vm308, 0.0
          %355 = vst.msk [vmem:[#allocation3 + $0x70] sm:$0xff] %vm308, 0.0
          %356 = vst.msk [vmem:[#allocation3 + $0x78] sm:$0xff] %vm308, 0.0
          %357 = vst.msk [vmem:[#allocation3 + $0x80] sm:$0xff] %vm308, 0.0
          %358 = vst.msk [vmem:[#allocation3 + $0x88] sm:$0xff] %vm308, 0.0
          %359 = vst.msk [vmem:[#allocation3 + $0x90] sm:$0xff] %vm308, 0.0
          %360 = vst.msk [vmem:[#allocation3 + $0x98] sm:$0xff] %vm308, 0.0
          %361 = vst.msk [vmem:[#allocation3 + $0xa0] sm:$0xff] %vm308, 0.0
          %362 = vst.msk [vmem:[#allocation3 + $0xa8] sm:$0xff] %vm308, 0.0
          %363 = vst.msk [vmem:[#allocation3 + $0xb0] sm:$0xff] %vm308, 0.0
          %364 = vst.msk [vmem:[#allocation3 + $0xb8] sm:$0xff] %vm308, 0.0
          %365 = vst.msk [vmem:[#allocation3 + $0xc0] sm:$0xff] %vm308, 0.0
          %366 = vst.msk [vmem:[#allocation3 + $0xc8] sm:$0xff] %vm308, 0.0
          %367 = vst.msk [vmem:[#allocation3 + $0xd0] sm:$0xff] %vm308, 0.0
          %368 = vst.msk [vmem:[#allocation3 + $0xd8] sm:$0xff] %vm308, 0.0
          %369 = vst.msk [vmem:[#allocation3 + $0xe0] sm:$0xff] %vm308, 0.0
          %370 = vst.msk [vmem:[#allocation3 + $0xe8] sm:$0xff] %vm308, 0.0
          %371 = vst.msk [vmem:[#allocation3 + $0xf0] sm:$0xff] %vm308, 0.0
          %372 = vst.msk [vmem:[#allocation3 + $0xf8] sm:$0xff] %vm308, 0.0
          %373 = vst [vmem:[#allocation4] sm:$0xff] 0.0
          %374 = vst [vmem:[#allocation4 + $0x8] sm:$0xff] 0.0
          %375 = vst [vmem:[#allocation4 + $0x10] sm:$0xff] 0.0
          %376 = vst [vmem:[#allocation4 + $0x18] sm:$0xff] 0.0
          %377 = vst [vmem:[#allocation4 + $0x20] sm:$0xff] 0.0
          %378 = vst [vmem:[#allocation4 + $0x28] sm:$0xff] 0.0
          %379 = vst [vmem:[#allocation4 + $0x30] sm:$0xff] 0.0
          %380 = vst [vmem:[#allocation4 + $0x38] sm:$0xff] 0.0
          %381 = vst [vmem:[#allocation4 + $0x40] sm:$0xff] 0.0
          %382 = vst [vmem:[#allocation4 + $0x48] sm:$0xff] 0.0
          %383 = vst [vmem:[#allocation4 + $0x50] sm:$0xff] 0.0
          %384 = vst [vmem:[#allocation4 + $0x58] sm:$0xff] 0.0
          %385 = vst [vmem:[#allocation4 + $0x60] sm:$0xff] 0.0
          %386 = vst [vmem:[#allocation4 + $0x68] sm:$0xff] 0.0
          %387 = vst [vmem:[#allocation4 + $0x70] sm:$0xff] 0.0
          %388 = vst [vmem:[#allocation4 + $0x78] sm:$0xff] 0.0
          %389 = vst [vmem:[#allocation4 + $0x80] sm:$0xff] 0.0
          %390 = vst [vmem:[#allocation4 + $0x88] sm:$0xff] 0.0
          %391 = vst [vmem:[#allocation4 + $0x90] sm:$0xff] 0.0
          %392 = vst [vmem:[#allocation4 + $0x98] sm:$0xff] 0.0
          %393 = vst [vmem:[#allocation4 + $0xa0] sm:$0xff] 0.0
          %394 = vst [vmem:[#allocation4 + $0xa8] sm:$0xff] 0.0
          %395 = vst [vmem:[#allocation4 + $0xb0] sm:$0xff] 0.0
          %396 = vst [vmem:[#allocation4 + $0xb8] sm:$0xff] 0.0
          %397 = vst [vmem:[#allocation4 + $0xc0] sm:$0xff] 0.0
          %398 = vst [vmem:[#allocation4 + $0xc8] sm:$0xff] 0.0
          %399 = vst [vmem:[#allocation4 + $0xd0] sm:$0xff] 0.0
          %400 = vst [vmem:[#allocation4 + $0xd8] sm:$0xff] 0.0
          %401 = vst [vmem:[#allocation4 + $0xe0] sm:$0xff] 0.0
          %402 = vst [vmem:[#allocation4 + $0xe8] sm:$0xff] 0.0
          %403 = vst [vmem:[#allocation4 + $0xf0] sm:$0xff] 0.0
          %404 = vst [vmem:[#allocation4 + $0xf8] sm:$0xff] 0.0
        $region48: #{tpu_custom_call.1} parent=31 // pred_fallthru
          _
        %v405 = vld [vmem:[%s248] sm:$0xf]
        %v406 = vld [vmem:[%s248 + $0x4] sm:$0xf]
        %v407 = vld [vmem:[%s248 + $0x8] sm:$0xf]
        %v408 = vld [vmem:[%s248 + $0xc] sm:$0xf]
        %v409 = vld [vmem:[%s248 + $0x10] sm:$0xf]
        %v410 = vld [vmem:[%s248 + $0x14] sm:$0xf]
        %v411 = vld [vmem:[%s248 + $0x18] sm:$0xf]
        %v412 = vld [vmem:[%s248 + $0x1c] sm:$0xf]
        %v413 = vld [vmem:[%s248 + $0x20] sm:$0xf]
        %v414 = vld [vmem:[%s248 + $0x24] sm:$0xf]
        %v415 = vld [vmem:[%s248 + $0x28] sm:$0xf]
        %v416 = vld [vmem:[%s248 + $0x2c] sm:$0xf]
        %v417 = vld [vmem:[%s248 + $0x30] sm:$0xf]
        %v418 = vld [vmem:[%s248 + $0x34] sm:$0xf]
        %v419 = vld [vmem:[%s248 + $0x38] sm:$0xf]
        %v420 = vld [vmem:[%s248 + $0x3c] sm:$0xf]
        %v421 = vld [vmem:[%s248 + $0x40] sm:$0xf]
        %v422 = vld [vmem:[%s248 + $0x44] sm:$0xf]
        %v423 = vld [vmem:[%s248 + $0x48] sm:$0xf]
        %v424 = vld [vmem:[%s248 + $0x4c] sm:$0xf]
        %v425 = vld [vmem:[%s248 + $0x50] sm:$0xf]
        %v426 = vld [vmem:[%s248 + $0x54] sm:$0xf]
        %v427 = vld [vmem:[%s248 + $0x58] sm:$0xf]
        %v428 = vld [vmem:[%s248 + $0x5c] sm:$0xf]
        %v429 = vld [vmem:[%s248 + $0x60] sm:$0xf]
        %v430 = vld [vmem:[%s248 + $0x64] sm:$0xf]
        %v431 = vld [vmem:[%s248 + $0x68] sm:$0xf]
        %v432 = vld [vmem:[%s248 + $0x6c] sm:$0xf]
        %v433 = vld [vmem:[%s248 + $0x70] sm:$0xf]
        %v434 = vld [vmem:[%s248 + $0x74] sm:$0xf]
        %v435 = vld [vmem:[%s248 + $0x78] sm:$0xf]
        %v436 = vld [vmem:[%s248 + $0x7c] sm:$0xf]
        %v437 = vld [vmem:[%s257] sm:$0xf]
        %v438 = vld [vmem:[%s257 + $0x4] sm:$0xf]
        %v439 = vld [vmem:[%s257 + $0x8] sm:$0xf]
        %v440 = vld [vmem:[%s257 + $0xc] sm:$0xf]
        %v441 = vld [vmem:[%s257 + $0x10] sm:$0xf]
        %v442 = vld [vmem:[%s257 + $0x14] sm:$0xf]
        %v443 = vld [vmem:[%s257 + $0x18] sm:$0xf]
        %v444 = vld [vmem:[%s257 + $0x1c] sm:$0xf]
        %v445 = vld [vmem:[%s257 + $0x20] sm:$0xf]
        %v446 = vld [vmem:[%s257 + $0x24] sm:$0xf]
        %v447 = vld [vmem:[%s257 + $0x28] sm:$0xf]
        %v448 = vld [vmem:[%s257 + $0x2c] sm:$0xf]
        %v449 = vld [vmem:[%s257 + $0x30] sm:$0xf]
        %v450 = vld [vmem:[%s257 + $0x34] sm:$0xf]
        %v451 = vld [vmem:[%s257 + $0x38] sm:$0xf]
        %v452 = vld [vmem:[%s257 + $0x3c] sm:$0xf]
        %v453 = vld [vmem:[%s257 + $0x40] sm:$0xf]
        %v454 = vld [vmem:[%s257 + $0x44] sm:$0xf]
        %v455 = vld [vmem:[%s257 + $0x48] sm:$0xf]
        %v456 = vld [vmem:[%s257 + $0x4c] sm:$0xf]
        %v457 = vld [vmem:[%s257 + $0x50] sm:$0xf]
        %v458 = vld [vmem:[%s257 + $0x54] sm:$0xf]
        %v459 = vld [vmem:[%s257 + $0x58] sm:$0xf]
        %v460 = vld [vmem:[%s257 + $0x5c] sm:$0xf]
        %v461 = vld [vmem:[%s257 + $0x60] sm:$0xf]
        %v462 = vld [vmem:[%s257 + $0x64] sm:$0xf]
        %v463 = vld [vmem:[%s257 + $0x68] sm:$0xf]
        %v464 = vld [vmem:[%s257 + $0x6c] sm:$0xf]
        %v465 = vld [vmem:[%s257 + $0x70] sm:$0xf]
        %v466 = vld [vmem:[%s257 + $0x74] sm:$0xf]
        %v467 = vld [vmem:[%s257 + $0x78] sm:$0xf]
        %v468 = vld [vmem:[%s257 + $0x7c] sm:$0xf]
        %v469 = vld [vmem:[%s266] sm:$0xf]
        %v470 = vld [vmem:[%s266 + $0x4] sm:$0xf]
        %v471 = vld [vmem:[%s266 + $0x8] sm:$0xf]
        %v472 = vld [vmem:[%s266 + $0xc] sm:$0xf]
        %v473 = vld [vmem:[%s266 + $0x10] sm:$0xf]
        %v474 = vld [vmem:[%s266 + $0x14] sm:$0xf]
        %v475 = vld [vmem:[%s266 + $0x18] sm:$0xf]
        %v476 = vld [vmem:[%s266 + $0x1c] sm:$0xf]
        %v477 = vld [vmem:[%s266 + $0x20] sm:$0xf]
        %v478 = vld [vmem:[%s266 + $0x24] sm:$0xf]
        %v479 = vld [vmem:[%s266 + $0x28] sm:$0xf]
        %v480 = vld [vmem:[%s266 + $0x2c] sm:$0xf]
        %v481 = vld [vmem:[%s266 + $0x30] sm:$0xf]
        %v482 = vld [vmem:[%s266 + $0x34] sm:$0xf]
        %v483 = vld [vmem:[%s266 + $0x38] sm:$0xf]
        %v484 = vld [vmem:[%s266 + $0x3c] sm:$0xf]
        %v485 = vld [vmem:[%s266 + $0x40] sm:$0xf]
        %v486 = vld [vmem:[%s266 + $0x44] sm:$0xf]
        %v487 = vld [vmem:[%s266 + $0x48] sm:$0xf]
        %v488 = vld [vmem:[%s266 + $0x4c] sm:$0xf]
        %v489 = vld [vmem:[%s266 + $0x50] sm:$0xf]
        %v490 = vld [vmem:[%s266 + $0x54] sm:$0xf]
        %v491 = vld [vmem:[%s266 + $0x58] sm:$0xf]
        %v492 = vld [vmem:[%s266 + $0x5c] sm:$0xf]
        %v493 = vld [vmem:[%s266 + $0x60] sm:$0xf]
        %v494 = vld [vmem:[%s266 + $0x64] sm:$0xf]
        %v495 = vld [vmem:[%s266 + $0x68] sm:$0xf]
        %v496 = vld [vmem:[%s266 + $0x6c] sm:$0xf]
        %v497 = vld [vmem:[%s266 + $0x70] sm:$0xf]
        %v498 = vld [vmem:[%s266 + $0x74] sm:$0xf]
        %v499 = vld [vmem:[%s266 + $0x78] sm:$0xf]
        %v500 = vld [vmem:[%s266 + $0x7c] sm:$0xf]
        %v533 = vunpack.c.l.b16 %v405
        %v534 = vunpack.c.l.b16 %v406
        %v535 = vunpack.c.l.b16 %v407
        %v536 = vunpack.c.l.b16 %v408
        %v537 = vunpack.c.l.b16 %v409
        %v538 = vunpack.c.l.b16 %v410
        %v539 = vunpack.c.l.b16 %v411
        %v540 = vunpack.c.l.b16 %v412
        %v541 = vunpack.c.l.b16 %v413
        %v542 = vunpack.c.l.b16 %v414
        %v543 = vunpack.c.l.b16 %v415
        %v544 = vunpack.c.l.b16 %v416
        %v545 = vunpack.c.l.b16 %v417
        %v546 = vunpack.c.l.b16 %v418
        %v547 = vunpack.c.l.b16 %v419
        %v548 = vunpack.c.l.b16 %v420
        %v549 = vunpack.c.l.b16 %v421
        %v550 = vunpack.c.l.b16 %v422
        %v551 = vunpack.c.l.b16 %v423
        %v552 = vunpack.c.l.b16 %v424
        %v553 = vunpack.c.l.b16 %v425
        %v554 = vunpack.c.l.b16 %v426
        %v555 = vunpack.c.l.b16 %v427
        %v556 = vunpack.c.l.b16 %v428
        %v557 = vunpack.c.l.b16 %v429
        %v558 = vunpack.c.l.b16 %v430
        %v559 = vunpack.c.l.b16 %v431
        %v560 = vunpack.c.l.b16 %v432
        %v561 = vunpack.c.l.b16 %v433
        %v562 = vunpack.c.l.b16 %v434
        %v563 = vunpack.c.l.b16 %v435
        %v564 = vunpack.c.l.b16 %v436
        %v565 = vpack.c.b16 %v534, %v533
        %v566 = vpack.c.b16 %v536, %v535
        %v567 = vpack.c.b16 %v538, %v537
        %v568 = vpack.c.b16 %v540, %v539
        %v569 = vpack.c.b16 %v542, %v541
        %v570 = vpack.c.b16 %v544, %v543
        %v571 = vpack.c.b16 %v546, %v545
        %v572 = vpack.c.b16 %v548, %v547
        %v573 = vpack.c.b16 %v550, %v549
        %v574 = vpack.c.b16 %v552, %v551
        %v575 = vpack.c.b16 %v554, %v553
        %v576 = vpack.c.b16 %v556, %v555
        %v577 = vpack.c.b16 %v558, %v557
        %v578 = vpack.c.b16 %v560, %v559
        %v579 = vpack.c.b16 %v562, %v561
        %v580 = vpack.c.b16 %v564, %v563
        %v629 = vunpack.c.l.b16 %v437
        %v630 = vunpack.c.l.b16 %v438
        %v631 = vunpack.c.l.b16 %v439
        %v632 = vunpack.c.l.b16 %v440
        %v633 = vunpack.c.l.b16 %v441
        %v634 = vunpack.c.l.b16 %v442
        %v635 = vunpack.c.l.b16 %v443
        %v636 = vunpack.c.l.b16 %v444
        %v637 = vunpack.c.l.b16 %v445
        %v638 = vunpack.c.l.b16 %v446
        %v639 = vunpack.c.l.b16 %v447
        %v640 = vunpack.c.l.b16 %v448
        %v641 = vunpack.c.l.b16 %v449
        %v642 = vunpack.c.l.b16 %v450
        %v643 = vunpack.c.l.b16 %v451
        %v644 = vunpack.c.l.b16 %v452
        %v645 = vunpack.c.l.b16 %v453
        %v646 = vunpack.c.l.b16 %v454
        %v647 = vunpack.c.l.b16 %v455
        %v648 = vunpack.c.l.b16 %v456
        %v649 = vunpack.c.l.b16 %v457
        %v650 = vunpack.c.l.b16 %v458
        %v651 = vunpack.c.l.b16 %v459
        %v652 = vunpack.c.l.b16 %v460
        %v653 = vunpack.c.l.b16 %v461
        %v654 = vunpack.c.l.b16 %v462
        %v655 = vunpack.c.l.b16 %v463
        %v656 = vunpack.c.l.b16 %v464
        %v657 = vunpack.c.l.b16 %v465
        %v658 = vunpack.c.l.b16 %v466
        %v659 = vunpack.c.l.b16 %v467
        %v660 = vunpack.c.l.b16 %v468
        %v661 = vpack.c.b16 %v630, %v629
        %v662 = vpack.c.b16 %v632, %v631
        %v663 = vpack.c.b16 %v634, %v633
        %v664 = vpack.c.b16 %v636, %v635
        %v665 = vpack.c.b16 %v638, %v637
        %v666 = vpack.c.b16 %v640, %v639
        %v667 = vpack.c.b16 %v642, %v641
        %v668 = vpack.c.b16 %v644, %v643
        %v669 = vpack.c.b16 %v646, %v645
        %v670 = vpack.c.b16 %v648, %v647
        %v671 = vpack.c.b16 %v650, %v649
        %v672 = vpack.c.b16 %v652, %v651
        %v673 = vpack.c.b16 %v654, %v653
        %v674 = vpack.c.b16 %v656, %v655
        %v675 = vpack.c.b16 %v658, %v657
        %v676 = vpack.c.b16 %v660, %v659
        %693 = vmatprep.subr.bf16.mxu0 0
        %694 = vmatpush1.bf16.xpose.msra.mxu0 %v668
        %695 = vmatprep.subr.bf16.mxu0 0
        %696 = vmatpush1.bf16.xpose.msra.mxu0 %v667
        %697 = vmatprep.subr.bf16.mxu0 0
        %698 = vmatpush1.bf16.xpose.msra.mxu0 %v666
        %699 = vmatprep.subr.bf16.mxu0 0
        %700 = vmatpush1.bf16.xpose.msra.mxu0 %v665
        %701 = vmatprep.subr.bf16.mxu0 0
        %702 = vmatpush1.bf16.xpose.msra.mxu0 %v664
        %703 = vmatprep.subr.bf16.mxu0 0
        %704 = vmatpush1.bf16.xpose.msra.mxu0 %v663
        %705 = vmatprep.subr.bf16.mxu0 0
        %706 = vmatpush1.bf16.xpose.msra.mxu0 %v662
        %707 = vmatprep.subr.bf16.mxu0 0
        %708 = vmatpush1.bf16.xpose.msra.mxu0 %v661
        %709 = vmatprep.subr.bf16.mxu0 0
        %710 = vmatpush2.bf16.xpose.msra.mxu0 %v676
        %711 = vmatprep.subr.bf16.mxu0 0
        %712 = vmatpush2.bf16.xpose.msra.mxu0 %v675
        %713 = vmatprep.subr.bf16.mxu0 0
        %714 = vmatpush2.bf16.xpose.msra.mxu0 %v674
        %715 = vmatprep.subr.bf16.mxu0 0
        %716 = vmatpush2.bf16.xpose.msra.mxu0 %v673
        %717 = vmatprep.subr.bf16.mxu0 0
        %718 = vmatpush2.bf16.xpose.msra.mxu0 %v672
        %719 = vmatprep.subr.bf16.mxu0 0
        %720 = vmatpush2.bf16.xpose.msra.mxu0 %v671
        %721 = vmatprep.subr.bf16.mxu0 0
        %722 = vmatpush2.bf16.xpose.msra.mxu0 %v670
        %723 = vmatprep.subr.bf16.mxu0 0
        %724 = vmatpush2.bf16.xpose.msra.mxu0 %v669
        %725 = vmatprep.mubr.bf16.mxu0 0
        %726 = vmatmul.mubr.bf16.gmra.mxu0 %v565
        %v727 = vpop.f32.mrf.mxu0
        %v728 = vadd.f32 0.0, %v727
        %v729 = vpop.f32.mrf.mxu0
        %v730 = vadd.f32 0.0, %v729
        %v731 = vpop.f32.mrf.mxu0
        %v732 = vadd.f32 0.0, %v731
        %v733 = vpop.f32.mrf.mxu0
        %v734 = vadd.f32 0.0, %v733
        %735 = vmatprep.mubr.bf16.mxu0 0
        %736 = vmatmul.mubr.bf16.gmra.mxu0 %v566
        %v737 = vpop.f32.mrf.mxu0
        %v738 = vadd.f32 0.0, %v737
        %v739 = vpop.f32.mrf.mxu0
        %v740 = vadd.f32 0.0, %v739
        %v741 = vpop.f32.mrf.mxu0
        %v742 = vadd.f32 0.0, %v741
        %v743 = vpop.f32.mrf.mxu0
        %v744 = vadd.f32 0.0, %v743
        %745 = vmatprep.mubr.bf16.mxu0 0
        %746 = vmatmul.mubr.bf16.gmra.mxu0 %v567
        %v747 = vpop.f32.mrf.mxu0
        %v748 = vadd.f32 0.0, %v747
        %v749 = vpop.f32.mrf.mxu0
        %v750 = vadd.f32 0.0, %v749
        %v751 = vpop.f32.mrf.mxu0
        %v752 = vadd.f32 0.0, %v751
        %v753 = vpop.f32.mrf.mxu0
        %v754 = vadd.f32 0.0, %v753
        %755 = vmatprep.mubr.bf16.mxu0 0
        %756 = vmatmul.mubr.bf16.gmra.mxu0 %v568
        %v757 = vpop.f32.mrf.mxu0
        %v758 = vadd.f32 0.0, %v757
        %v759 = vpop.f32.mrf.mxu0
        %v760 = vadd.f32 0.0, %v759
        %v761 = vpop.f32.mrf.mxu0
        %v762 = vadd.f32 0.0, %v761
        %v763 = vpop.f32.mrf.mxu0
        %v764 = vadd.f32 0.0, %v763
        %765 = vmatprep.mubr.bf16.mxu0 0
        %766 = vmatmul.mubr.bf16.gmra.mxu0 %v569
        %v767 = vpop.f32.mrf.mxu0
        %v768 = vadd.f32 0.0, %v767
        %v769 = vpop.f32.mrf.mxu0
        %v770 = vadd.f32 0.0, %v769
        %v771 = vpop.f32.mrf.mxu0
        %v772 = vadd.f32 0.0, %v771
        %v773 = vpop.f32.mrf.mxu0
        %v774 = vadd.f32 0.0, %v773
        %775 = vmatprep.mubr.bf16.mxu0 0
        %776 = vmatmul.mubr.bf16.gmra.mxu0 %v570
        %v777 = vpop.f32.mrf.mxu0
        %v778 = vadd.f32 0.0, %v777
        %v779 = vpop.f32.mrf.mxu0
        %v780 = vadd.f32 0.0, %v779
        %v781 = vpop.f32.mrf.mxu0
        %v782 = vadd.f32 0.0, %v781
        %v783 = vpop.f32.mrf.mxu0
        %v784 = vadd.f32 0.0, %v783
        %785 = vmatprep.mubr.bf16.mxu0 0
        %786 = vmatmul.mubr.bf16.gmra.mxu0 %v571
        %v787 = vpop.f32.mrf.mxu0
        %v788 = vadd.f32 0.0, %v787
        %v789 = vpop.f32.mrf.mxu0
        %v790 = vadd.f32 0.0, %v789
        %v791 = vpop.f32.mrf.mxu0
        %v792 = vadd.f32 0.0, %v791
        %v793 = vpop.f32.mrf.mxu0
        %v794 = vadd.f32 0.0, %v793
        %795 = vmatprep.mubr.bf16.mxu0 0
        %796 = vmatmul.mubr.bf16.gmra.mxu0 %v572
        %v797 = vpop.f32.mrf.mxu0
        %v798 = vadd.f32 0.0, %v797
        %v799 = vpop.f32.mrf.mxu0
        %v800 = vadd.f32 0.0, %v799
        %v801 = vpop.f32.mrf.mxu0
        %v802 = vadd.f32 0.0, %v801
        %v803 = vpop.f32.mrf.mxu0
        %v804 = vadd.f32 0.0, %v803
        %805 = vmatprep.mubr.bf16.mxu0 0
        %806 = vmatmul.mubr.bf16.gmra.mxu0 %v573
        %v807 = vpop.f32.mrf.mxu0
        %v808 = vadd.f32 0.0, %v807
        %v809 = vpop.f32.mrf.mxu0
        %v810 = vadd.f32 0.0, %v809
        %v811 = vpop.f32.mrf.mxu0
        %v812 = vadd.f32 0.0, %v811
        %v813 = vpop.f32.mrf.mxu0
        %v814 = vadd.f32 0.0, %v813
        %815 = vmatprep.mubr.bf16.mxu0 0
        %816 = vmatmul.mubr.bf16.gmra.mxu0 %v574
        %v817 = vpop.f32.mrf.mxu0
        %v818 = vadd.f32 0.0, %v817
        %v819 = vpop.f32.mrf.mxu0
        %v820 = vadd.f32 0.0, %v819
        %v821 = vpop.f32.mrf.mxu0
        %v822 = vadd.f32 0.0, %v821
        %v823 = vpop.f32.mrf.mxu0
        %v824 = vadd.f32 0.0, %v823
        %825 = vmatprep.mubr.bf16.mxu0 0
        %826 = vmatmul.mubr.bf16.gmra.mxu0 %v575
        %v827 = vpop.f32.mrf.mxu0
        %v828 = vadd.f32 0.0, %v827
        %v829 = vpop.f32.mrf.mxu0
        %v830 = vadd.f32 0.0, %v829
        %v831 = vpop.f32.mrf.mxu0
        %v832 = vadd.f32 0.0, %v831
        %v833 = vpop.f32.mrf.mxu0
        %v834 = vadd.f32 0.0, %v833
        %835 = vmatprep.mubr.bf16.mxu0 0
        %836 = vmatmul.mubr.bf16.gmra.mxu0 %v576
        %v837 = vpop.f32.mrf.mxu0
        %v838 = vadd.f32 0.0, %v837
        %v839 = vpop.f32.mrf.mxu0
        %v840 = vadd.f32 0.0, %v839
        %v841 = vpop.f32.mrf.mxu0
        %v842 = vadd.f32 0.0, %v841
        %v843 = vpop.f32.mrf.mxu0
        %v844 = vadd.f32 0.0, %v843
        %845 = vmatprep.mubr.bf16.mxu0 0
        %846 = vmatmul.mubr.bf16.gmra.mxu0 %v577
        %v847 = vpop.f32.mrf.mxu0
        %v848 = vadd.f32 0.0, %v847
        %v849 = vpop.f32.mrf.mxu0
        %v850 = vadd.f32 0.0, %v849
        %v851 = vpop.f32.mrf.mxu0
        %v852 = vadd.f32 0.0, %v851
        %v853 = vpop.f32.mrf.mxu0
        %v854 = vadd.f32 0.0, %v853
        %855 = vmatprep.mubr.bf16.mxu0 0
        %856 = vmatmul.mubr.bf16.gmra.mxu0 %v578
        %v857 = vpop.f32.mrf.mxu0
        %v858 = vadd.f32 0.0, %v857
        %v859 = vpop.f32.mrf.mxu0
        %v860 = vadd.f32 0.0, %v859
        %v861 = vpop.f32.mrf.mxu0
        %v862 = vadd.f32 0.0, %v861
        %v863 = vpop.f32.mrf.mxu0
        %v864 = vadd.f32 0.0, %v863
        %865 = vmatprep.mubr.bf16.mxu0 0
        %866 = vmatmul.mubr.bf16.gmra.mxu0 %v579
        %v867 = vpop.f32.mrf.mxu0
        %v868 = vadd.f32 0.0, %v867
        %v869 = vpop.f32.mrf.mxu0
        %v870 = vadd.f32 0.0, %v869
        %v871 = vpop.f32.mrf.mxu0
        %v872 = vadd.f32 0.0, %v871
        %v873 = vpop.f32.mrf.mxu0
        %v874 = vadd.f32 0.0, %v873
        %875 = vmatprep.mubr.bf16.mxu0 0
        %876 = vmatmul.mubr.bf16.gmra.mxu0 %v580
        %v877 = vpop.f32.mrf.mxu0
        %v878 = vadd.f32 0.0, %v877
        %v879 = vpop.f32.mrf.mxu0
        %v880 = vadd.f32 0.0, %v879
        %v881 = vpop.f32.mrf.mxu0
        %v882 = vadd.f32 0.0, %v881
        %v883 = vpop.f32.mrf.mxu0
        %v884 = vadd.f32 0.0, %v883
        %885 = vdwg.mxu0
        %v886 = vmul.f32 %v728, 0.088388346
        %v887 = vmul.f32 %v730, 0.088388346
        %v888 = vmul.f32 %v732, 0.088388346
        %v889 = vmul.f32 %v734, 0.088388346
        %v890 = vmul.f32 %v738, 0.088388346
        %v891 = vmul.f32 %v740, 0.088388346
        %v892 = vmul.f32 %v742, 0.088388346
        %v893 = vmul.f32 %v744, 0.088388346
        %v894 = vmul.f32 %v748, 0.088388346
        %v895 = vmul.f32 %v750, 0.088388346
        %v896 = vmul.f32 %v752, 0.088388346
        %v897 = vmul.f32 %v754, 0.088388346
        %v898 = vmul.f32 %v758, 0.088388346
        %v899 = vmul.f32 %v760, 0.088388346
        %v900 = vmul.f32 %v762, 0.088388346
        %v901 = vmul.f32 %v764, 0.088388346
        %v902 = vmul.f32 %v768, 0.088388346
        %v903 = vmul.f32 %v770, 0.088388346
        %v904 = vmul.f32 %v772, 0.088388346
        %v905 = vmul.f32 %v774, 0.088388346
        %v906 = vmul.f32 %v778, 0.088388346
        %v907 = vmul.f32 %v780, 0.088388346
        %v908 = vmul.f32 %v782, 0.088388346
        %v909 = vmul.f32 %v784, 0.088388346
        %v910 = vmul.f32 %v788, 0.088388346
        %v911 = vmul.f32 %v790, 0.088388346
        %v912 = vmul.f32 %v792, 0.088388346
        %v913 = vmul.f32 %v794, 0.088388346
        %v914 = vmul.f32 %v798, 0.088388346
        %v915 = vmul.f32 %v800, 0.088388346
        %v916 = vmul.f32 %v802, 0.088388346
        %v917 = vmul.f32 %v804, 0.088388346
        %v918 = vmul.f32 %v808, 0.088388346
        %v919 = vmul.f32 %v810, 0.088388346
        %v920 = vmul.f32 %v812, 0.088388346
        %v921 = vmul.f32 %v814, 0.088388346
        %v922 = vmul.f32 %v818, 0.088388346
        %v923 = vmul.f32 %v820, 0.088388346
        %v924 = vmul.f32 %v822, 0.088388346
        %v925 = vmul.f32 %v824, 0.088388346
        %v926 = vmul.f32 %v828, 0.088388346
        %v927 = vmul.f32 %v830, 0.088388346
        %v928 = vmul.f32 %v832, 0.088388346
        %v929 = vmul.f32 %v834, 0.088388346
        %v930 = vmul.f32 %v838, 0.088388346
        %v931 = vmul.f32 %v840, 0.088388346
        %v932 = vmul.f32 %v842, 0.088388346
        %v933 = vmul.f32 %v844, 0.088388346
        %v934 = vmul.f32 %v848, 0.088388346
        %v935 = vmul.f32 %v850, 0.088388346
        %v936 = vmul.f32 %v852, 0.088388346
        %v937 = vmul.f32 %v854, 0.088388346
        %v938 = vmul.f32 %v858, 0.088388346
        %v939 = vmul.f32 %v860, 0.088388346
        %v940 = vmul.f32 %v862, 0.088388346
        %v941 = vmul.f32 %v864, 0.088388346
        %v942 = vmul.f32 %v868, 0.088388346
        %v943 = vmul.f32 %v870, 0.088388346
        %v944 = vmul.f32 %v872, 0.088388346
        %v945 = vmul.f32 %v874, 0.088388346
        %v946 = vmul.f32 %v878, 0.088388346
        %v947 = vmul.f32 %v880, 0.088388346
        %v948 = vmul.f32 %v882, 0.088388346
        %v949 = vmul.f32 %v884, 0.088388346
        %v950 = vld [vmem:[#allocation2] sm:$0xff]
        %v951 = vld [vmem:[#allocation2 + $0x8] sm:$0xff]
        %v952 = vld [vmem:[#allocation2 + $0x10] sm:$0xff]
        %v953 = vld [vmem:[#allocation2 + $0x18] sm:$0xff]
        %v954 = vld [vmem:[#allocation2 + $0x20] sm:$0xff]
        %v955 = vld [vmem:[#allocation2 + $0x28] sm:$0xff]
        %v956 = vld [vmem:[#allocation2 + $0x30] sm:$0xff]
        %v957 = vld [vmem:[#allocation2 + $0x38] sm:$0xff]
        %v958 = vld [vmem:[#allocation2 + $0x40] sm:$0xff]
        %v959 = vld [vmem:[#allocation2 + $0x48] sm:$0xff]
        %v960 = vld [vmem:[#allocation2 + $0x50] sm:$0xff]
        %v961 = vld [vmem:[#allocation2 + $0x58] sm:$0xff]
        %v962 = vld [vmem:[#allocation2 + $0x60] sm:$0xff]
        %v963 = vld [vmem:[#allocation2 + $0x68] sm:$0xff]
        %v964 = vld [vmem:[#allocation2 + $0x70] sm:$0xff]
        %v965 = vld [vmem:[#allocation2 + $0x78] sm:$0xff]
        %v966 = vld [vmem:[#allocation2 + $0x80] sm:$0xff]
        %v967 = vld [vmem:[#allocation2 + $0x88] sm:$0xff]
        %v968 = vld [vmem:[#allocation2 + $0x90] sm:$0xff]
        %v969 = vld [vmem:[#allocation2 + $0x98] sm:$0xff]
        %v970 = vld [vmem:[#allocation2 + $0xa0] sm:$0xff]
        %v971 = vld [vmem:[#allocation2 + $0xa8] sm:$0xff]
        %v972 = vld [vmem:[#allocation2 + $0xb0] sm:$0xff]
        %v973 = vld [vmem:[#allocation2 + $0xb8] sm:$0xff]
        %v974 = vld [vmem:[#allocation2 + $0xc0] sm:$0xff]
        %v975 = vld [vmem:[#allocation2 + $0xc8] sm:$0xff]
        %v976 = vld [vmem:[#allocation2 + $0xd0] sm:$0xff]
        %v977 = vld [vmem:[#allocation2 + $0xd8] sm:$0xff]
        %v978 = vld [vmem:[#allocation2 + $0xe0] sm:$0xff]
        %v979 = vld [vmem:[#allocation2 + $0xe8] sm:$0xff]
        %v980 = vld [vmem:[#allocation2 + $0xf0] sm:$0xff]
        %v981 = vld [vmem:[#allocation2 + $0xf8] sm:$0xff]
        %v982 = vmax.f32 %v886, %v887
        %983 = vmax.xlane.f32.xlu0 %v982
        %v984 = vpop.xlane.xlu0 %983
        %v985 = vmax.f32 %v888, %v889
        %986 = vmax.xlane.f32.xlu0 %v985
        %v987 = vpop.xlane.xlu0 %986
        %v988 = vmax.f32 %v890, %v891
        %989 = vmax.xlane.f32.xlu0 %v988
        %v990 = vpop.xlane.xlu0 %989
        %v991 = vmax.f32 %v892, %v893
        %992 = vmax.xlane.f32.xlu0 %v991
        %v993 = vpop.xlane.xlu0 %992
        %v994 = vmax.f32 %v894, %v895
        %995 = vmax.xlane.f32.xlu0 %v994
        %v996 = vpop.xlane.xlu0 %995
        %v997 = vmax.f32 %v896, %v897
        %998 = vmax.xlane.f32.xlu0 %v997
        %v999 = vpop.xlane.xlu0 %998
        %v1000 = vmax.f32 %v898, %v899
        %1001 = vmax.xlane.f32.xlu0 %v1000
        %v1002 = vpop.xlane.xlu0 %1001
        %v1003 = vmax.f32 %v900, %v901
        %1004 = vmax.xlane.f32.xlu0 %v1003
        %v1005 = vpop.xlane.xlu0 %1004
        %v1006 = vmax.f32 %v902, %v903
        %1007 = vmax.xlane.f32.xlu0 %v1006
        %v1008 = vpop.xlane.xlu0 %1007
        %v1009 = vmax.f32 %v904, %v905
        %1010 = vmax.xlane.f32.xlu0 %v1009
        %v1011 = vpop.xlane.xlu0 %1010
        %v1012 = vmax.f32 %v906, %v907
        %1013 = vmax.xlane.f32.xlu0 %v1012
        %v1014 = vpop.xlane.xlu0 %1013
        %v1015 = vmax.f32 %v908, %v909
        %1016 = vmax.xlane.f32.xlu0 %v1015
        %v1017 = vpop.xlane.xlu0 %1016
        %v1018 = vmax.f32 %v910, %v911
        %1019 = vmax.xlane.f32.xlu0 %v1018
        %v1020 = vpop.xlane.xlu0 %1019
        %v1021 = vmax.f32 %v912, %v913
        %1022 = vmax.xlane.f32.xlu0 %v1021
        %v1023 = vpop.xlane.xlu0 %1022
        %v1024 = vmax.f32 %v914, %v915
        %1025 = vmax.xlane.f32.xlu0 %v1024
        %v1026 = vpop.xlane.xlu0 %1025
        %v1027 = vmax.f32 %v916, %v917
        %1028 = vmax.xlane.f32.xlu0 %v1027
        %v1029 = vpop.xlane.xlu0 %1028
        %v1030 = vmax.f32 %v918, %v919
        %1031 = vmax.xlane.f32.xlu0 %v1030
        %v1032 = vpop.xlane.xlu0 %1031
        %v1033 = vmax.f32 %v920, %v921
        %1034 = vmax.xlane.f32.xlu0 %v1033
        %v1035 = vpop.xlane.xlu0 %1034
        %v1036 = vmax.f32 %v922, %v923
        %1037 = vmax.xlane.f32.xlu0 %v1036
        %v1038 = vpop.xlane.xlu0 %1037
        %v1039 = vmax.f32 %v924, %v925
        %1040 = vmax.xlane.f32.xlu0 %v1039
        %v1041 = vpop.xlane.xlu0 %1040
        %v1042 = vmax.f32 %v926, %v927
        %1043 = vmax.xlane.f32.xlu0 %v1042
        %v1044 = vpop.xlane.xlu0 %1043
        %v1045 = vmax.f32 %v928, %v929
        %1046 = vmax.xlane.f32.xlu0 %v1045
        %v1047 = vpop.xlane.xlu0 %1046
        %v1048 = vmax.f32 %v930, %v931
        %1049 = vmax.xlane.f32.xlu0 %v1048
        %v1050 = vpop.xlane.xlu0 %1049
        %v1051 = vmax.f32 %v932, %v933
        %1052 = vmax.xlane.f32.xlu0 %v1051
        %v1053 = vpop.xlane.xlu0 %1052
        %v1054 = vmax.f32 %v934, %v935
        %1055 = vmax.xlane.f32.xlu0 %v1054
        %v1056 = vpop.xlane.xlu0 %1055
        %v1057 = vmax.f32 %v936, %v937
        %1058 = vmax.xlane.f32.xlu0 %v1057
        %v1059 = vpop.xlane.xlu0 %1058
        %v1060 = vmax.f32 %v938, %v939
        %1061 = vmax.xlane.f32.xlu0 %v1060
        %v1062 = vpop.xlane.xlu0 %1061
        %v1063 = vmax.f32 %v940, %v941
        %1064 = vmax.xlane.f32.xlu0 %v1063
        %v1065 = vpop.xlane.xlu0 %1064
        %v1066 = vmax.f32 %v942, %v943
        %1067 = vmax.xlane.f32.xlu0 %v1066
        %v1068 = vpop.xlane.xlu0 %1067
        %v1069 = vmax.f32 %v944, %v945
        %1070 = vmax.xlane.f32.xlu0 %v1069
        %v1071 = vpop.xlane.xlu0 %1070
        %v1072 = vmax.f32 %v946, %v947
        %1073 = vmax.xlane.f32.xlu0 %v1072
        %v1074 = vpop.xlane.xlu0 %1073
        %v1075 = vmax.f32 %v948, %v949
        %1076 = vmax.xlane.f32.xlu0 %v1075
        %v1077 = vpop.xlane.xlu0 %1076
        %v1078 = vmax.f32 %v950, %v984
        %v1079 = vmax.f32 %v951, %v987
        %v1080 = vmax.f32 %v952, %v990
        %v1081 = vmax.f32 %v953, %v993
        %v1082 = vmax.f32 %v954, %v996
        %v1083 = vmax.f32 %v955, %v999
        %v1084 = vmax.f32 %v956, %v1002
        %v1085 = vmax.f32 %v957, %v1005
        %v1086 = vmax.f32 %v958, %v1008
        %v1087 = vmax.f32 %v959, %v1011
        %v1088 = vmax.f32 %v960, %v1014
        %v1089 = vmax.f32 %v961, %v1017
        %v1090 = vmax.f32 %v962, %v1020
        %v1091 = vmax.f32 %v963, %v1023
        %v1092 = vmax.f32 %v964, %v1026
        %v1093 = vmax.f32 %v965, %v1029
        %v1094 = vmax.f32 %v966, %v1032
        %v1095 = vmax.f32 %v967, %v1035
        %v1096 = vmax.f32 %v968, %v1038
        %v1097 = vmax.f32 %v969, %v1041
        %v1098 = vmax.f32 %v970, %v1044
        %v1099 = vmax.f32 %v971, %v1047
        %v1100 = vmax.f32 %v972, %v1050
        %v1101 = vmax.f32 %v973, %v1053
        %v1102 = vmax.f32 %v974, %v1056
        %v1103 = vmax.f32 %v975, %v1059
        %v1104 = vmax.f32 %v976, %v1062
        %v1105 = vmax.f32 %v977, %v1065
        %v1106 = vmax.f32 %v978, %v1068
        %v1107 = vmax.f32 %v979, %v1071
        %v1108 = vmax.f32 %v980, %v1074
        %v1109 = vmax.f32 %v981, %v1077
        %v1110 = vsub.f32 %v950, %v1078
        %v1111 = vsub.f32 %v951, %v1079
        %v1112 = vsub.f32 %v952, %v1080
        %v1113 = vsub.f32 %v953, %v1081
        %v1114 = vsub.f32 %v954, %v1082
        %v1115 = vsub.f32 %v955, %v1083
        %v1116 = vsub.f32 %v956, %v1084
        %v1117 = vsub.f32 %v957, %v1085
        %v1118 = vsub.f32 %v958, %v1086
        %v1119 = vsub.f32 %v959, %v1087
        %v1120 = vsub.f32 %v960, %v1088
        %v1121 = vsub.f32 %v961, %v1089
        %v1122 = vsub.f32 %v962, %v1090
        %v1123 = vsub.f32 %v963, %v1091
        %v1124 = vsub.f32 %v964, %v1092
        %v1125 = vsub.f32 %v965, %v1093
        %v1126 = vsub.f32 %v966, %v1094
        %v1127 = vsub.f32 %v967, %v1095
        %v1128 = vsub.f32 %v968, %v1096
        %v1129 = vsub.f32 %v969, %v1097
        %v1130 = vsub.f32 %v970, %v1098
        %v1131 = vsub.f32 %v971, %v1099
        %v1132 = vsub.f32 %v972, %v1100
        %v1133 = vsub.f32 %v973, %v1101
        %v1134 = vsub.f32 %v974, %v1102
        %v1135 = vsub.f32 %v975, %v1103
        %v1136 = vsub.f32 %v976, %v1104
        %v1137 = vsub.f32 %v977, %v1105
        %v1138 = vsub.f32 %v978, %v1106
        %v1139 = vsub.f32 %v979, %v1107
        %v1140 = vsub.f32 %v980, %v1108
        %v1141 = vsub.f32 %v981, %v1109
        %v1142 = vmul.f32 %v1110, 1.442695
        %v1143 = vpow.pop %v1142
        %v1144 = vmul.f32 %v1111, 1.442695
        %v1145 = vpow.pop %v1144
        %v1146 = vmul.f32 %v1112, 1.442695
        %v1147 = vpow.pop %v1146
        %v1148 = vmul.f32 %v1113, 1.442695
        %v1149 = vpow.pop %v1148
        %v1150 = vmul.f32 %v1114, 1.442695
        %v1151 = vpow.pop %v1150
        %v1152 = vmul.f32 %v1115, 1.442695
        %v1153 = vpow.pop %v1152
        %v1154 = vmul.f32 %v1116, 1.442695
        %v1155 = vpow.pop %v1154
        %v1156 = vmul.f32 %v1117, 1.442695
        %v1157 = vpow.pop %v1156
        %v1158 = vmul.f32 %v1118, 1.442695
        %v1159 = vpow.pop %v1158
        %v1160 = vmul.f32 %v1119, 1.442695
        %v1161 = vpow.pop %v1160
        %v1162 = vmul.f32 %v1120, 1.442695
        %v1163 = vpow.pop %v1162
        %v1164 = vmul.f32 %v1121, 1.442695
        %v1165 = vpow.pop %v1164
        %v1166 = vmul.f32 %v1122, 1.442695
        %v1167 = vpow.pop %v1166
        %v1168 = vmul.f32 %v1123, 1.442695
        %v1169 = vpow.pop %v1168
        %v1170 = vmul.f32 %v1124, 1.442695
        %v1171 = vpow.pop %v1170
        %v1172 = vmul.f32 %v1125, 1.442695
        %v1173 = vpow.pop %v1172
        %v1174 = vmul.f32 %v1126, 1.442695
        %v1175 = vpow.pop %v1174
        %v1176 = vmul.f32 %v1127, 1.442695
        %v1177 = vpow.pop %v1176
        %v1178 = vmul.f32 %v1128, 1.442695
        %v1179 = vpow.pop %v1178
        %v1180 = vmul.f32 %v1129, 1.442695
        %v1181 = vpow.pop %v1180
        %v1182 = vmul.f32 %v1130, 1.442695
        %v1183 = vpow.pop %v1182
        %v1184 = vmul.f32 %v1131, 1.442695
        %v1185 = vpow.pop %v1184
        %v1186 = vmul.f32 %v1132, 1.442695
        %v1187 = vpow.pop %v1186
        %v1188 = vmul.f32 %v1133, 1.442695
        %v1189 = vpow.pop %v1188
        %v1190 = vmul.f32 %v1134, 1.442695
        %v1191 = vpow.pop %v1190
        %v1192 = vmul.f32 %v1135, 1.442695
        %v1193 = vpow.pop %v1192
        %v1194 = vmul.f32 %v1136, 1.442695
        %v1195 = vpow.pop %v1194
        %v1196 = vmul.f32 %v1137, 1.442695
        %v1197 = vpow.pop %v1196
        %v1198 = vmul.f32 %v1138, 1.442695
        %v1199 = vpow.pop %v1198
        %v1200 = vmul.f32 %v1139, 1.442695
        %v1201 = vpow.pop %v1200
        %v1202 = vmul.f32 %v1140, 1.442695
        %v1203 = vpow.pop %v1202
        %v1204 = vmul.f32 %v1141, 1.442695
        %v1205 = vpow.pop %v1204
        %1207 = vset.pattern.permute.xlu0 0
        %1208 = vperm.xlu0 %1207, %v1078
        %v1209 = vpop.permute.xlu0 %1208
        %1212 = vset.pattern.permute.xlu0 0
        %1213 = vperm.xlu0 %1212, %v1079
        %v1214 = vpop.permute.xlu0 %1213
        %1217 = vset.pattern.permute.xlu0 0
        %1218 = vperm.xlu0 %1217, %v1080
        %v1219 = vpop.permute.xlu0 %1218
        %1222 = vset.pattern.permute.xlu0 0
        %1223 = vperm.xlu0 %1222, %v1081
        %v1224 = vpop.permute.xlu0 %1223
        %1227 = vset.pattern.permute.xlu0 0
        %1228 = vperm.xlu0 %1227, %v1082
        %v1229 = vpop.permute.xlu0 %1228
        %1232 = vset.pattern.permute.xlu0 0
        %1233 = vperm.xlu0 %1232, %v1083
        %v1234 = vpop.permute.xlu0 %1233
        %1237 = vset.pattern.permute.xlu0 0
        %1238 = vperm.xlu0 %1237, %v1084
        %v1239 = vpop.permute.xlu0 %1238
        %1242 = vset.pattern.permute.xlu0 0
        %1243 = vperm.xlu0 %1242, %v1085
        %v1244 = vpop.permute.xlu0 %1243
        %1247 = vset.pattern.permute.xlu0 0
        %1248 = vperm.xlu0 %1247, %v1086
        %v1249 = vpop.permute.xlu0 %1248
        %1252 = vset.pattern.permute.xlu0 0
        %1253 = vperm.xlu0 %1252, %v1087
        %v1254 = vpop.permute.xlu0 %1253
        %1257 = vset.pattern.permute.xlu0 0
        %1258 = vperm.xlu0 %1257, %v1088
        %v1259 = vpop.permute.xlu0 %1258
        %1262 = vset.pattern.permute.xlu0 0
        %1263 = vperm.xlu0 %1262, %v1089
        %v1264 = vpop.permute.xlu0 %1263
        %1267 = vset.pattern.permute.xlu0 0
        %1268 = vperm.xlu0 %1267, %v1090
        %v1269 = vpop.permute.xlu0 %1268
        %1272 = vset.pattern.permute.xlu0 0
        %1273 = vperm.xlu0 %1272, %v1091
        %v1274 = vpop.permute.xlu0 %1273
        %1277 = vset.pattern.permute.xlu0 0
        %1278 = vperm.xlu0 %1277, %v1092
        %v1279 = vpop.permute.xlu0 %1278
        %1282 = vset.pattern.permute.xlu0 0
        %1283 = vperm.xlu0 %1282, %v1093
        %v1284 = vpop.permute.xlu0 %1283
        %1287 = vset.pattern.permute.xlu0 0
        %1288 = vperm.xlu0 %1287, %v1094
        %v1289 = vpop.permute.xlu0 %1288
        %1292 = vset.pattern.permute.xlu0 0
        %1293 = vperm.xlu0 %1292, %v1095
        %v1294 = vpop.permute.xlu0 %1293
        %1297 = vset.pattern.permute.xlu0 0
        %1298 = vperm.xlu0 %1297, %v1096
        %v1299 = vpop.permute.xlu0 %1298
        %1302 = vset.pattern.permute.xlu0 0
        %1303 = vperm.xlu0 %1302, %v1097
        %v1304 = vpop.permute.xlu0 %1303
        %1307 = vset.pattern.permute.xlu0 0
        %1308 = vperm.xlu0 %1307, %v1098
        %v1309 = vpop.permute.xlu0 %1308
        %1312 = vset.pattern.permute.xlu0 0
        %1313 = vperm.xlu0 %1312, %v1099
        %v1314 = vpop.permute.xlu0 %1313
        %1317 = vset.pattern.permute.xlu0 0
        %1318 = vperm.xlu0 %1317, %v1100
        %v1319 = vpop.permute.xlu0 %1318
        %1322 = vset.pattern.permute.xlu0 0
        %1323 = vperm.xlu0 %1322, %v1101
        %v1324 = vpop.permute.xlu0 %1323
        %1327 = vset.pattern.permute.xlu0 0
        %1328 = vperm.xlu0 %1327, %v1102
        %v1329 = vpop.permute.xlu0 %1328
        %1332 = vset.pattern.permute.xlu0 0
        %1333 = vperm.xlu0 %1332, %v1103
        %v1334 = vpop.permute.xlu0 %1333
        %1337 = vset.pattern.permute.xlu0 0
        %1338 = vperm.xlu0 %1337, %v1104
        %v1339 = vpop.permute.xlu0 %1338
        %1342 = vset.pattern.permute.xlu0 0
        %1343 = vperm.xlu0 %1342, %v1105
        %v1344 = vpop.permute.xlu0 %1343
        %1347 = vset.pattern.permute.xlu0 0
        %1348 = vperm.xlu0 %1347, %v1106
        %v1349 = vpop.permute.xlu0 %1348
        %1352 = vset.pattern.permute.xlu0 0
        %1353 = vperm.xlu0 %1352, %v1107
        %v1354 = vpop.permute.xlu0 %1353
        %1357 = vset.pattern.permute.xlu0 0
        %1358 = vperm.xlu0 %1357, %v1108
        %v1359 = vpop.permute.xlu0 %1358
        %1362 = vset.pattern.permute.xlu0 0
        %1363 = vperm.xlu0 %1362, %v1109
        %v1364 = vpop.permute.xlu0 %1363
        %v1366 = vsub.f32 %v886, %v1209
        %v1367 = vsub.f32 %v887, %v1209
        %v1368 = vsub.f32 %v888, %v1214
        %v1369 = vsub.f32 %v889, %v1214
        %v1370 = vsub.f32 %v890, %v1219
        %v1371 = vsub.f32 %v891, %v1219
        %v1372 = vsub.f32 %v892, %v1224
        %v1373 = vsub.f32 %v893, %v1224
        %v1374 = vsub.f32 %v894, %v1229
        %v1375 = vsub.f32 %v895, %v1229
        %v1376 = vsub.f32 %v896, %v1234
        %v1377 = vsub.f32 %v897, %v1234
        %v1378 = vsub.f32 %v898, %v1239
        %v1379 = vsub.f32 %v899, %v1239
        %v1380 = vsub.f32 %v900, %v1244
        %v1381 = vsub.f32 %v901, %v1244
        %v1382 = vsub.f32 %v902, %v1249
        %v1383 = vsub.f32 %v903, %v1249
        %v1384 = vsub.f32 %v904, %v1254
        %v1385 = vsub.f32 %v905, %v1254
        %v1386 = vsub.f32 %v906, %v1259
        %v1387 = vsub.f32 %v907, %v1259
        %v1388 = vsub.f32 %v908, %v1264
        %v1389 = vsub.f32 %v909, %v1264
        %v1390 = vsub.f32 %v910, %v1269
        %v1391 = vsub.f32 %v911, %v1269
        %v1392 = vsub.f32 %v912, %v1274
        %v1393 = vsub.f32 %v913, %v1274
        %v1394 = vsub.f32 %v914, %v1279
        %v1395 = vsub.f32 %v915, %v1279
        %v1396 = vsub.f32 %v916, %v1284
        %v1397 = vsub.f32 %v917, %v1284
        %v1398 = vsub.f32 %v918, %v1289
        %v1399 = vsub.f32 %v919, %v1289
        %v1400 = vsub.f32 %v920, %v1294
        %v1401 = vsub.f32 %v921, %v1294
        %v1402 = vsub.f32 %v922, %v1299
        %v1403 = vsub.f32 %v923, %v1299
        %v1404 = vsub.f32 %v924, %v1304
        %v1405 = vsub.f32 %v925, %v1304
        %v1406 = vsub.f32 %v926, %v1309
        %v1407 = vsub.f32 %v927, %v1309
        %v1408 = vsub.f32 %v928, %v1314
        %v1409 = vsub.f32 %v929, %v1314
        %v1410 = vsub.f32 %v930, %v1319
        %v1411 = vsub.f32 %v931, %v1319
        %v1412 = vsub.f32 %v932, %v1324
        %v1413 = vsub.f32 %v933, %v1324
        %v1414 = vsub.f32 %v934, %v1329
        %v1415 = vsub.f32 %v935, %v1329
        %v1416 = vsub.f32 %v936, %v1334
        %v1417 = vsub.f32 %v937, %v1334
        %v1418 = vsub.f32 %v938, %v1339
        %v1419 = vsub.f32 %v939, %v1339
        %v1420 = vsub.f32 %v940, %v1344
        %v1421 = vsub.f32 %v941, %v1344
        %v1422 = vsub.f32 %v942, %v1349
        %v1423 = vsub.f32 %v943, %v1349
        %v1424 = vsub.f32 %v944, %v1354
        %v1425 = vsub.f32 %v945, %v1354
        %v1426 = vsub.f32 %v946, %v1359
        %v1427 = vsub.f32 %v947, %v1359
        %v1428 = vsub.f32 %v948, %v1364
        %v1429 = vsub.f32 %v949, %v1364
        %v1430 = vmul.f32 %v1366, 1.442695
        %v1431 = vpow.pop %v1430
        %v1432 = vmul.f32 %v1367, 1.442695
        %v1433 = vpow.pop %v1432
        %v1434 = vmul.f32 %v1368, 1.442695
        %v1435 = vpow.pop %v1434
        %v1436 = vmul.f32 %v1369, 1.442695
        %v1437 = vpow.pop %v1436
        %v1438 = vmul.f32 %v1370, 1.442695
        %v1439 = vpow.pop %v1438
        %v1440 = vmul.f32 %v1371, 1.442695
        %v1441 = vpow.pop %v1440
        %v1442 = vmul.f32 %v1372, 1.442695
        %v1443 = vpow.pop %v1442
        %v1444 = vmul.f32 %v1373, 1.442695
        %v1445 = vpow.pop %v1444
        %v1446 = vmul.f32 %v1374, 1.442695
        %v1447 = vpow.pop %v1446
        %v1448 = vmul.f32 %v1375, 1.442695
        %v1449 = vpow.pop %v1448
        %v1450 = vmul.f32 %v1376, 1.442695
        %v1451 = vpow.pop %v1450
        %v1452 = vmul.f32 %v1377, 1.442695
        %v1453 = vpow.pop %v1452
        %v1454 = vmul.f32 %v1378, 1.442695
        %v1455 = vpow.pop %v1454
        %v1456 = vmul.f32 %v1379, 1.442695
        %v1457 = vpow.pop %v1456
        %v1458 = vmul.f32 %v1380, 1.442695
        %v1459 = vpow.pop %v1458
        %v1460 = vmul.f32 %v1381, 1.442695
        %v1461 = vpow.pop %v1460
        %v1462 = vmul.f32 %v1382, 1.442695
        %v1463 = vpow.pop %v1462
        %v1464 = vmul.f32 %v1383, 1.442695
        %v1465 = vpow.pop %v1464
        %v1466 = vmul.f32 %v1384, 1.442695
        %v1467 = vpow.pop %v1466
        %v1468 = vmul.f32 %v1385, 1.442695
        %v1469 = vpow.pop %v1468
        %v1470 = vmul.f32 %v1386, 1.442695
        %v1471 = vpow.pop %v1470
        %v1472 = vmul.f32 %v1387, 1.442695
        %v1473 = vpow.pop %v1472
        %v1474 = vmul.f32 %v1388, 1.442695
        %v1475 = vpow.pop %v1474
        %v1476 = vmul.f32 %v1389, 1.442695
        %v1477 = vpow.pop %v1476
        %v1478 = vmul.f32 %v1390, 1.442695
        %v1479 = vpow.pop %v1478
        %v1480 = vmul.f32 %v1391, 1.442695
        %v1481 = vpow.pop %v1480
        %v1482 = vmul.f32 %v1392, 1.442695
        %v1483 = vpow.pop %v1482
        %v1484 = vmul.f32 %v1393, 1.442695
        %v1485 = vpow.pop %v1484
        %v1486 = vmul.f32 %v1394, 1.442695
        %v1487 = vpow.pop %v1486
        %v1488 = vmul.f32 %v1395, 1.442695
        %v1489 = vpow.pop %v1488
        %v1490 = vmul.f32 %v1396, 1.442695
        %v1491 = vpow.pop %v1490
        %v1492 = vmul.f32 %v1397, 1.442695
        %v1493 = vpow.pop %v1492
        %v1494 = vmul.f32 %v1398, 1.442695
        %v1495 = vpow.pop %v1494
        %v1496 = vmul.f32 %v1399, 1.442695
        %v1497 = vpow.pop %v1496
        %v1498 = vmul.f32 %v1400, 1.442695
        %v1499 = vpow.pop %v1498
        %v1500 = vmul.f32 %v1401, 1.442695
        %v1501 = vpow.pop %v1500
        %v1502 = vmul.f32 %v1402, 1.442695
        %v1503 = vpow.pop %v1502
        %v1504 = vmul.f32 %v1403, 1.442695
        %v1505 = vpow.pop %v1504
        %v1506 = vmul.f32 %v1404, 1.442695
        %v1507 = vpow.pop %v1506
        %v1508 = vmul.f32 %v1405, 1.442695
        %v1509 = vpow.pop %v1508
        %v1510 = vmul.f32 %v1406, 1.442695
        %v1511 = vpow.pop %v1510
        %v1512 = vmul.f32 %v1407, 1.442695
        %v1513 = vpow.pop %v1512
        %v1514 = vmul.f32 %v1408, 1.442695
        %v1515 = vpow.pop %v1514
        %v1516 = vmul.f32 %v1409, 1.442695
        %v1517 = vpow.pop %v1516
        %v1518 = vmul.f32 %v1410, 1.442695
        %v1519 = vpow.pop %v1518
        %v1520 = vmul.f32 %v1411, 1.442695
        %v1521 = vpow.pop %v1520
        %v1522 = vmul.f32 %v1412, 1.442695
        %v1523 = vpow.pop %v1522
        %v1524 = vmul.f32 %v1413, 1.442695
        %v1525 = vpow.pop %v1524
        %v1526 = vmul.f32 %v1414, 1.442695
        %v1527 = vpow.pop %v1526
        %v1528 = vmul.f32 %v1415, 1.442695
        %v1529 = vpow.pop %v1528
        %v1530 = vmul.f32 %v1416, 1.442695
        %v1531 = vpow.pop %v1530
        %v1532 = vmul.f32 %v1417, 1.442695
        %v1533 = vpow.pop %v1532
        %v1534 = vmul.f32 %v1418, 1.442695
        %v1535 = vpow.pop %v1534
        %v1536 = vmul.f32 %v1419, 1.442695
        %v1537 = vpow.pop %v1536
        %v1538 = vmul.f32 %v1420, 1.442695
        %v1539 = vpow.pop %v1538
        %v1540 = vmul.f32 %v1421, 1.442695
        %v1541 = vpow.pop %v1540
        %v1542 = vmul.f32 %v1422, 1.442695
        %v1543 = vpow.pop %v1542
        %v1544 = vmul.f32 %v1423, 1.442695
        %v1545 = vpow.pop %v1544
        %v1546 = vmul.f32 %v1424, 1.442695
        %v1547 = vpow.pop %v1546
        %v1548 = vmul.f32 %v1425, 1.442695
        %v1549 = vpow.pop %v1548
        %v1550 = vmul.f32 %v1426, 1.442695
        %v1551 = vpow.pop %v1550
        %v1552 = vmul.f32 %v1427, 1.442695
        %v1553 = vpow.pop %v1552
        %v1554 = vmul.f32 %v1428, 1.442695
        %v1555 = vpow.pop %v1554
        %v1556 = vmul.f32 %v1429, 1.442695
        %v1557 = vpow.pop %v1556
        %v1558 = vld [vmem:[#allocation3] sm:$0xff]
        %v1559 = vld [vmem:[#allocation3 + $0x8] sm:$0xff]
        %v1560 = vld [vmem:[#allocation3 + $0x10] sm:$0xff]
        %v1561 = vld [vmem:[#allocation3 + $0x18] sm:$0xff]
        %v1562 = vld [vmem:[#allocation3 + $0x20] sm:$0xff]
        %v1563 = vld [vmem:[#allocation3 + $0x28] sm:$0xff]
        %v1564 = vld [vmem:[#allocation3 + $0x30] sm:$0xff]
        %v1565 = vld [vmem:[#allocation3 + $0x38] sm:$0xff]
        %v1566 = vld [vmem:[#allocation3 + $0x40] sm:$0xff]
        %v1567 = vld [vmem:[#allocation3 + $0x48] sm:$0xff]
        %v1568 = vld [vmem:[#allocation3 + $0x50] sm:$0xff]
        %v1569 = vld [vmem:[#allocation3 + $0x58] sm:$0xff]
        %v1570 = vld [vmem:[#allocation3 + $0x60] sm:$0xff]
        %v1571 = vld [vmem:[#allocation3 + $0x68] sm:$0xff]
        %v1572 = vld [vmem:[#allocation3 + $0x70] sm:$0xff]
        %v1573 = vld [vmem:[#allocation3 + $0x78] sm:$0xff]
        %v1574 = vld [vmem:[#allocation3 + $0x80] sm:$0xff]
        %v1575 = vld [vmem:[#allocation3 + $0x88] sm:$0xff]
        %v1576 = vld [vmem:[#allocation3 + $0x90] sm:$0xff]
        %v1577 = vld [vmem:[#allocation3 + $0x98] sm:$0xff]
        %v1578 = vld [vmem:[#allocation3 + $0xa0] sm:$0xff]
        %v1579 = vld [vmem:[#allocation3 + $0xa8] sm:$0xff]
        %v1580 = vld [vmem:[#allocation3 + $0xb0] sm:$0xff]
        %v1581 = vld [vmem:[#allocation3 + $0xb8] sm:$0xff]
        %v1582 = vld [vmem:[#allocation3 + $0xc0] sm:$0xff]
        %v1583 = vld [vmem:[#allocation3 + $0xc8] sm:$0xff]
        %v1584 = vld [vmem:[#allocation3 + $0xd0] sm:$0xff]
        %v1585 = vld [vmem:[#allocation3 + $0xd8] sm:$0xff]
        %v1586 = vld [vmem:[#allocation3 + $0xe0] sm:$0xff]
        %v1587 = vld [vmem:[#allocation3 + $0xe8] sm:$0xff]
        %v1588 = vld [vmem:[#allocation3 + $0xf0] sm:$0xff]
        %v1589 = vld [vmem:[#allocation3 + $0xf8] sm:$0xff]
        %v1590 = vmul.f32 %v1143, %v1558
        %v1591 = vmul.f32 %v1145, %v1559
        %v1592 = vmul.f32 %v1147, %v1560
        %v1593 = vmul.f32 %v1149, %v1561
        %v1594 = vmul.f32 %v1151, %v1562
        %v1595 = vmul.f32 %v1153, %v1563
        %v1596 = vmul.f32 %v1155, %v1564
        %v1597 = vmul.f32 %v1157, %v1565
        %v1598 = vmul.f32 %v1159, %v1566
        %v1599 = vmul.f32 %v1161, %v1567
        %v1600 = vmul.f32 %v1163, %v1568
        %v1601 = vmul.f32 %v1165, %v1569
        %v1602 = vmul.f32 %v1167, %v1570
        %v1603 = vmul.f32 %v1169, %v1571
        %v1604 = vmul.f32 %v1171, %v1572
        %v1605 = vmul.f32 %v1173, %v1573
        %v1606 = vmul.f32 %v1175, %v1574
        %v1607 = vmul.f32 %v1177, %v1575
        %v1608 = vmul.f32 %v1179, %v1576
        %v1609 = vmul.f32 %v1181, %v1577
        %v1610 = vmul.f32 %v1183, %v1578
        %v1611 = vmul.f32 %v1185, %v1579
        %v1612 = vmul.f32 %v1187, %v1580
        %v1613 = vmul.f32 %v1189, %v1581
        %v1614 = vmul.f32 %v1191, %v1582
        %v1615 = vmul.f32 %v1193, %v1583
        %v1616 = vmul.f32 %v1195, %v1584
        %v1617 = vmul.f32 %v1197, %v1585
        %v1618 = vmul.f32 %v1199, %v1586
        %v1619 = vmul.f32 %v1201, %v1587
        %v1620 = vmul.f32 %v1203, %v1588
        %v1621 = vmul.f32 %v1205, %v1589
        %v1622 = vadd.f32 %v1431, %v1433
        %1623 = vadd.xlane.f32.xlu0 %v1622
        %v1624 = vpop.xlane.xlu0 %1623
        %v1625 = vadd.f32 %v1435, %v1437
        %1626 = vadd.xlane.f32.xlu0 %v1625
        %v1627 = vpop.xlane.xlu0 %1626
        %v1628 = vadd.f32 %v1439, %v1441
        %1629 = vadd.xlane.f32.xlu0 %v1628
        %v1630 = vpop.xlane.xlu0 %1629
        %v1631 = vadd.f32 %v1443, %v1445
        %1632 = vadd.xlane.f32.xlu0 %v1631
        %v1633 = vpop.xlane.xlu0 %1632
        %v1634 = vadd.f32 %v1447, %v1449
        %1635 = vadd.xlane.f32.xlu0 %v1634
        %v1636 = vpop.xlane.xlu0 %1635
        %v1637 = vadd.f32 %v1451, %v1453
        %1638 = vadd.xlane.f32.xlu0 %v1637
        %v1639 = vpop.xlane.xlu0 %1638
        %v1640 = vadd.f32 %v1455, %v1457
        %1641 = vadd.xlane.f32.xlu0 %v1640
        %v1642 = vpop.xlane.xlu0 %1641
        %v1643 = vadd.f32 %v1459, %v1461
        %1644 = vadd.xlane.f32.xlu0 %v1643
        %v1645 = vpop.xlane.xlu0 %1644
        %v1646 = vadd.f32 %v1463, %v1465
        %1647 = vadd.xlane.f32.xlu0 %v1646
        %v1648 = vpop.xlane.xlu0 %1647
        %v1649 = vadd.f32 %v1467, %v1469
        %1650 = vadd.xlane.f32.xlu0 %v1649
        %v1651 = vpop.xlane.xlu0 %1650
        %v1652 = vadd.f32 %v1471, %v1473
        %1653 = vadd.xlane.f32.xlu0 %v1652
        %v1654 = vpop.xlane.xlu0 %1653
        %v1655 = vadd.f32 %v1475, %v1477
        %1656 = vadd.xlane.f32.xlu0 %v1655
        %v1657 = vpop.xlane.xlu0 %1656
        %v1658 = vadd.f32 %v1479, %v1481
        %1659 = vadd.xlane.f32.xlu0 %v1658
        %v1660 = vpop.xlane.xlu0 %1659
        %v1661 = vadd.f32 %v1483, %v1485
        %1662 = vadd.xlane.f32.xlu0 %v1661
        %v1663 = vpop.xlane.xlu0 %1662
        %v1664 = vadd.f32 %v1487, %v1489
        %1665 = vadd.xlane.f32.xlu0 %v1664
        %v1666 = vpop.xlane.xlu0 %1665
        %v1667 = vadd.f32 %v1491, %v1493
        %1668 = vadd.xlane.f32.xlu0 %v1667
        %v1669 = vpop.xlane.xlu0 %1668
        %v1670 = vadd.f32 %v1495, %v1497
        %1671 = vadd.xlane.f32.xlu0 %v1670
        %v1672 = vpop.xlane.xlu0 %1671
        %v1673 = vadd.f32 %v1499, %v1501
        %1674 = vadd.xlane.f32.xlu0 %v1673
        %v1675 = vpop.xlane.xlu0 %1674
        %v1676 = vadd.f32 %v1503, %v1505
        %1677 = vadd.xlane.f32.xlu0 %v1676
        %v1678 = vpop.xlane.xlu0 %1677
        %v1679 = vadd.f32 %v1507, %v1509
        %1680 = vadd.xlane.f32.xlu0 %v1679
        %v1681 = vpop.xlane.xlu0 %1680
        %v1682 = vadd.f32 %v1511, %v1513
        %1683 = vadd.xlane.f32.xlu0 %v1682
        %v1684 = vpop.xlane.xlu0 %1683
        %v1685 = vadd.f32 %v1515, %v1517
        %1686 = vadd.xlane.f32.xlu0 %v1685
        %v1687 = vpop.xlane.xlu0 %1686
        %v1688 = vadd.f32 %v1519, %v1521
        %1689 = vadd.xlane.f32.xlu0 %v1688
        %v1690 = vpop.xlane.xlu0 %1689
        %v1691 = vadd.f32 %v1523, %v1525
        %1692 = vadd.xlane.f32.xlu0 %v1691
        %v1693 = vpop.xlane.xlu0 %1692
        %v1694 = vadd.f32 %v1527, %v1529
        %1695 = vadd.xlane.f32.xlu0 %v1694
        %v1696 = vpop.xlane.xlu0 %1695
        %v1697 = vadd.f32 %v1531, %v1533
        %1698 = vadd.xlane.f32.xlu0 %v1697
        %v1699 = vpop.xlane.xlu0 %1698
        %v1700 = vadd.f32 %v1535, %v1537
        %1701 = vadd.xlane.f32.xlu0 %v1700
        %v1702 = vpop.xlane.xlu0 %1701
        %v1703 = vadd.f32 %v1539, %v1541
        %1704 = vadd.xlane.f32.xlu0 %v1703
        %v1705 = vpop.xlane.xlu0 %1704
        %v1706 = vadd.f32 %v1543, %v1545
        %1707 = vadd.xlane.f32.xlu0 %v1706
        %v1708 = vpop.xlane.xlu0 %1707
        %v1709 = vadd.f32 %v1547, %v1549
        %1710 = vadd.xlane.f32.xlu0 %v1709
        %v1711 = vpop.xlane.xlu0 %1710
        %v1712 = vadd.f32 %v1551, %v1553
        %1713 = vadd.xlane.f32.xlu0 %v1712
        %v1714 = vpop.xlane.xlu0 %1713
        %v1715 = vadd.f32 %v1555, %v1557
        %1716 = vadd.xlane.f32.xlu0 %v1715
        %v1717 = vpop.xlane.xlu0 %1716
        %v1718 = vadd.f32 %v1590, %v1624
        %v1719 = vadd.f32 %v1591, %v1627
        %v1720 = vadd.f32 %v1592, %v1630
        %v1721 = vadd.f32 %v1593, %v1633
        %v1722 = vadd.f32 %v1594, %v1636
        %v1723 = vadd.f32 %v1595, %v1639
        %v1724 = vadd.f32 %v1596, %v1642
        %v1725 = vadd.f32 %v1597, %v1645
        %v1726 = vadd.f32 %v1598, %v1648
        %v1727 = vadd.f32 %v1599, %v1651
        %v1728 = vadd.f32 %v1600, %v1654
        %v1729 = vadd.f32 %v1601, %v1657
        %v1730 = vadd.f32 %v1602, %v1660
        %v1731 = vadd.f32 %v1603, %v1663
        %v1732 = vadd.f32 %v1604, %v1666
        %v1733 = vadd.f32 %v1605, %v1669
        %v1734 = vadd.f32 %v1606, %v1672
        %v1735 = vadd.f32 %v1607, %v1675
        %v1736 = vadd.f32 %v1608, %v1678
        %v1737 = vadd.f32 %v1609, %v1681
        %v1738 = vadd.f32 %v1610, %v1684
        %v1739 = vadd.f32 %v1611, %v1687
        %v1740 = vadd.f32 %v1612, %v1690
        %v1741 = vadd.f32 %v1613, %v1693
        %v1742 = vadd.f32 %v1614, %v1696
        %v1743 = vadd.f32 %v1615, %v1699
        %v1744 = vadd.f32 %v1616, %v1702
        %v1745 = vadd.f32 %v1617, %v1705
        %v1746 = vadd.f32 %v1618, %v1708
        %v1747 = vadd.f32 %v1619, %v1711
        %v1748 = vadd.f32 %v1620, %v1714
        %v1749 = vadd.f32 %v1621, %v1717
        %vm1750 = vcmask 7168
        %1751 = vst.msk [vmem:[#allocation3] sm:$0xff] %vm1750, %v1718
        %1752 = vst.msk [vmem:[#allocation3 + $0x8] sm:$0xff] %vm1750, %v1719
        %1753 = vst.msk [vmem:[#allocation3 + $0x10] sm:$0xff] %vm1750, %v1720
        %1754 = vst.msk [vmem:[#allocation3 + $0x18] sm:$0xff] %vm1750, %v1721
        %1755 = vst.msk [vmem:[#allocation3 + $0x20] sm:$0xff] %vm1750, %v1722
        %1756 = vst.msk [vmem:[#allocation3 + $0x28] sm:$0xff] %vm1750, %v1723
        %1757 = vst.msk [vmem:[#allocation3 + $0x30] sm:$0xff] %vm1750, %v1724
        %1758 = vst.msk [vmem:[#allocation3 + $0x38] sm:$0xff] %vm1750, %v1725
        %1759 = vst.msk [vmem:[#allocation3 + $0x40] sm:$0xff] %vm1750, %v1726
        %1760 = vst.msk [vmem:[#allocation3 + $0x48] sm:$0xff] %vm1750, %v1727
        %1761 = vst.msk [vmem:[#allocation3 + $0x50] sm:$0xff] %vm1750, %v1728
        %1762 = vst.msk [vmem:[#allocation3 + $0x58] sm:$0xff] %vm1750, %v1729
        %1763 = vst.msk [vmem:[#allocation3 + $0x60] sm:$0xff] %vm1750, %v1730
        %1764 = vst.msk [vmem:[#allocation3 + $0x68] sm:$0xff] %vm1750, %v1731
        %1765 = vst.msk [vmem:[#allocation3 + $0x70] sm:$0xff] %vm1750, %v1732
        %1766 = vst.msk [vmem:[#allocation3 + $0x78] sm:$0xff] %vm1750, %v1733
        %1767 = vst.msk [vmem:[#allocation3 + $0x80] sm:$0xff] %vm1750, %v1734
        %1768 = vst.msk [vmem:[#allocation3 + $0x88] sm:$0xff] %vm1750, %v1735
        %1769 = vst.msk [vmem:[#allocation3 + $0x90] sm:$0xff] %vm1750, %v1736
        %1770 = vst.msk [vmem:[#allocation3 + $0x98] sm:$0xff] %vm1750, %v1737
        %1771 = vst.msk [vmem:[#allocation3 + $0xa0] sm:$0xff] %vm1750, %v1738
        %1772 = vst.msk [vmem:[#allocation3 + $0xa8] sm:$0xff] %vm1750, %v1739
        %1773 = vst.msk [vmem:[#allocation3 + $0xb0] sm:$0xff] %vm1750, %v1740
        %1774 = vst.msk [vmem:[#allocation3 + $0xb8] sm:$0xff] %vm1750, %v1741
        %1775 = vst.msk [vmem:[#allocation3 + $0xc0] sm:$0xff] %vm1750, %v1742
        %1776 = vst.msk [vmem:[#allocation3 + $0xc8] sm:$0xff] %vm1750, %v1743
        %1777 = vst.msk [vmem:[#allocation3 + $0xd0] sm:$0xff] %vm1750, %v1744
        %1778 = vst.msk [vmem:[#allocation3 + $0xd8] sm:$0xff] %vm1750, %v1745
        %1779 = vst.msk [vmem:[#allocation3 + $0xe0] sm:$0xff] %vm1750, %v1746
        %1780 = vst.msk [vmem:[#allocation3 + $0xe8] sm:$0xff] %vm1750, %v1747
        %1781 = vst.msk [vmem:[#allocation3 + $0xf0] sm:$0xff] %vm1750, %v1748
        %1782 = vst.msk [vmem:[#allocation3 + $0xf8] sm:$0xff] %vm1750, %v1749
        %v1783 = vld [vmem:[#allocation4] sm:$0xff]
        %v1784 = vld [vmem:[#allocation4 + $0x8] sm:$0xff]
        %v1785 = vld [vmem:[#allocation4 + $0x10] sm:$0xff]
        %v1786 = vld [vmem:[#allocation4 + $0x18] sm:$0xff]
        %v1787 = vld [vmem:[#allocation4 + $0x20] sm:$0xff]
        %v1788 = vld [vmem:[#allocation4 + $0x28] sm:$0xff]
        %v1789 = vld [vmem:[#allocation4 + $0x30] sm:$0xff]
        %v1790 = vld [vmem:[#allocation4 + $0x38] sm:$0xff]
        %v1791 = vld [vmem:[#allocation4 + $0x40] sm:$0xff]
        %v1792 = vld [vmem:[#allocation4 + $0x48] sm:$0xff]
        %v1793 = vld [vmem:[#allocation4 + $0x50] sm:$0xff]
        %v1794 = vld [vmem:[#allocation4 + $0x58] sm:$0xff]
        %v1795 = vld [vmem:[#allocation4 + $0x60] sm:$0xff]
        %v1796 = vld [vmem:[#allocation4 + $0x68] sm:$0xff]
        %v1797 = vld [vmem:[#allocation4 + $0x70] sm:$0xff]
        %v1798 = vld [vmem:[#allocation4 + $0x78] sm:$0xff]
        %v1799 = vld [vmem:[#allocation4 + $0x80] sm:$0xff]
        %v1800 = vld [vmem:[#allocation4 + $0x88] sm:$0xff]
        %v1801 = vld [vmem:[#allocation4 + $0x90] sm:$0xff]
        %v1802 = vld [vmem:[#allocation4 + $0x98] sm:$0xff]
        %v1803 = vld [vmem:[#allocation4 + $0xa0] sm:$0xff]
        %v1804 = vld [vmem:[#allocation4 + $0xa8] sm:$0xff]
        %v1805 = vld [vmem:[#allocation4 + $0xb0] sm:$0xff]
        %v1806 = vld [vmem:[#allocation4 + $0xb8] sm:$0xff]
        %v1807 = vld [vmem:[#allocation4 + $0xc0] sm:$0xff]
        %v1808 = vld [vmem:[#allocation4 + $0xc8] sm:$0xff]
        %v1809 = vld [vmem:[#allocation4 + $0xd0] sm:$0xff]
        %v1810 = vld [vmem:[#allocation4 + $0xd8] sm:$0xff]
        %v1811 = vld [vmem:[#allocation4 + $0xe0] sm:$0xff]
        %v1812 = vld [vmem:[#allocation4 + $0xe8] sm:$0xff]
        %v1813 = vld [vmem:[#allocation4 + $0xf0] sm:$0xff]
        %v1814 = vld [vmem:[#allocation4 + $0xf8] sm:$0xff]
        %1816 = vset.pattern.permute.xlu0 0
        %1817 = vperm.xlu0 %1816, %v1143
        %v1818 = vpop.permute.xlu0 %1817
        %1821 = vset.pattern.permute.xlu0 0
        %1822 = vperm.xlu0 %1821, %v1145
        %v1823 = vpop.permute.xlu0 %1822
        %1826 = vset.pattern.permute.xlu0 0
        %1827 = vperm.xlu0 %1826, %v1147
        %v1828 = vpop.permute.xlu0 %1827
        %1831 = vset.pattern.permute.xlu0 0
        %1832 = vperm.xlu0 %1831, %v1149
        %v1833 = vpop.permute.xlu0 %1832
        %1836 = vset.pattern.permute.xlu0 0
        %1837 = vperm.xlu0 %1836, %v1151
        %v1838 = vpop.permute.xlu0 %1837
        %1841 = vset.pattern.permute.xlu0 0
        %1842 = vperm.xlu0 %1841, %v1153
        %v1843 = vpop.permute.xlu0 %1842
        %1846 = vset.pattern.permute.xlu0 0
        %1847 = vperm.xlu0 %1846, %v1155
        %v1848 = vpop.permute.xlu0 %1847
        %1851 = vset.pattern.permute.xlu0 0
        %1852 = vperm.xlu0 %1851, %v1157
        %v1853 = vpop.permute.xlu0 %1852
        %1856 = vset.pattern.permute.xlu0 0
        %1857 = vperm.xlu0 %1856, %v1159
        %v1858 = vpop.permute.xlu0 %1857
        %1861 = vset.pattern.permute.xlu0 0
        %1862 = vperm.xlu0 %1861, %v1161
        %v1863 = vpop.permute.xlu0 %1862
        %1866 = vset.pattern.permute.xlu0 0
        %1867 = vperm.xlu0 %1866, %v1163
        %v1868 = vpop.permute.xlu0 %1867
        %1871 = vset.pattern.permute.xlu0 0
        %1872 = vperm.xlu0 %1871, %v1165
        %v1873 = vpop.permute.xlu0 %1872
        %1876 = vset.pattern.permute.xlu0 0
        %1877 = vperm.xlu0 %1876, %v1167
        %v1878 = vpop.permute.xlu0 %1877
        %1881 = vset.pattern.permute.xlu0 0
        %1882 = vperm.xlu0 %1881, %v1169
        %v1883 = vpop.permute.xlu0 %1882
        %1886 = vset.pattern.permute.xlu0 0
        %1887 = vperm.xlu0 %1886, %v1171
        %v1888 = vpop.permute.xlu0 %1887
        %1891 = vset.pattern.permute.xlu0 0
        %1892 = vperm.xlu0 %1891, %v1173
        %v1893 = vpop.permute.xlu0 %1892
        %1896 = vset.pattern.permute.xlu0 0
        %1897 = vperm.xlu0 %1896, %v1175
        %v1898 = vpop.permute.xlu0 %1897
        %1901 = vset.pattern.permute.xlu0 0
        %1902 = vperm.xlu0 %1901, %v1177
        %v1903 = vpop.permute.xlu0 %1902
        %1906 = vset.pattern.permute.xlu0 0
        %1907 = vperm.xlu0 %1906, %v1179
        %v1908 = vpop.permute.xlu0 %1907
        %1911 = vset.pattern.permute.xlu0 0
        %1912 = vperm.xlu0 %1911, %v1181
        %v1913 = vpop.permute.xlu0 %1912
        %1916 = vset.pattern.permute.xlu0 0
        %1917 = vperm.xlu0 %1916, %v1183
        %v1918 = vpop.permute.xlu0 %1917
        %1921 = vset.pattern.permute.xlu0 0
        %1922 = vperm.xlu0 %1921, %v1185
        %v1923 = vpop.permute.xlu0 %1922
        %1926 = vset.pattern.permute.xlu0 0
        %1927 = vperm.xlu0 %1926, %v1187
        %v1928 = vpop.permute.xlu0 %1927
        %1931 = vset.pattern.permute.xlu0 0
        %1932 = vperm.xlu0 %1931, %v1189
        %v1933 = vpop.permute.xlu0 %1932
        %1936 = vset.pattern.permute.xlu0 0
        %1937 = vperm.xlu0 %1936, %v1191
        %v1938 = vpop.permute.xlu0 %1937
        %1941 = vset.pattern.permute.xlu0 0
        %1942 = vperm.xlu0 %1941, %v1193
        %v1943 = vpop.permute.xlu0 %1942
        %1946 = vset.pattern.permute.xlu0 0
        %1947 = vperm.xlu0 %1946, %v1195
        %v1948 = vpop.permute.xlu0 %1947
        %1951 = vset.pattern.permute.xlu0 0
        %1952 = vperm.xlu0 %1951, %v1197
        %v1953 = vpop.permute.xlu0 %1952
        %1956 = vset.pattern.permute.xlu0 0
        %1957 = vperm.xlu0 %1956, %v1199
        %v1958 = vpop.permute.xlu0 %1957
        %1961 = vset.pattern.permute.xlu0 0
        %1962 = vperm.xlu0 %1961, %v1201
        %v1963 = vpop.permute.xlu0 %1962
        %1966 = vset.pattern.permute.xlu0 0
        %1967 = vperm.xlu0 %1966, %v1203
        %v1968 = vpop.permute.xlu0 %1967
        %1971 = vset.pattern.permute.xlu0 0
        %1972 = vperm.xlu0 %1971, %v1205
        %v1973 = vpop.permute.xlu0 %1972
        %v1975 = vmul.f32 %v1818, %v1783
        %v1976 = vmul.f32 %v1823, %v1784
        %v1977 = vmul.f32 %v1828, %v1785
        %v1978 = vmul.f32 %v1833, %v1786
        %v1979 = vmul.f32 %v1838, %v1787
        %v1980 = vmul.f32 %v1843, %v1788
        %v1981 = vmul.f32 %v1848, %v1789
        %v1982 = vmul.f32 %v1853, %v1790
        %v1983 = vmul.f32 %v1858, %v1791
        %v1984 = vmul.f32 %v1863, %v1792
        %v1985 = vmul.f32 %v1868, %v1793
        %v1986 = vmul.f32 %v1873, %v1794
        %v1987 = vmul.f32 %v1878, %v1795
        %v1988 = vmul.f32 %v1883, %v1796
        %v1989 = vmul.f32 %v1888, %v1797
        %v1990 = vmul.f32 %v1893, %v1798
        %v1991 = vmul.f32 %v1898, %v1799
        %v1992 = vmul.f32 %v1903, %v1800
        %v1993 = vmul.f32 %v1908, %v1801
        %v1994 = vmul.f32 %v1913, %v1802
        %v1995 = vmul.f32 %v1918, %v1803
        %v1996 = vmul.f32 %v1923, %v1804
        %v1997 = vmul.f32 %v1928, %v1805
        %v1998 = vmul.f32 %v1933, %v1806
        %v1999 = vmul.f32 %v1938, %v1807
        %v2000 = vmul.f32 %v1943, %v1808
        %v2001 = vmul.f32 %v1948, %v1809
        %v2002 = vmul.f32 %v1953, %v1810
        %v2003 = vmul.f32 %v1958, %v1811
        %v2004 = vmul.f32 %v1963, %v1812
        %v2005 = vmul.f32 %v1968, %v1813
        %v2006 = vmul.f32 %v1973, %v1814
        %v2007 = vpack.c.bf16 %v1435, %v1431
        %v2008 = vpack.c.bf16 %v1437, %v1433
        %v2009 = vpack.c.bf16 %v1443, %v1439
        %v2010 = vpack.c.bf16 %v1445, %v1441
        %v2011 = vpack.c.bf16 %v1451, %v1447
        %v2012 = vpack.c.bf16 %v1453, %v1449
        %v2013 = vpack.c.bf16 %v1459, %v1455
        %v2014 = vpack.c.bf16 %v1461, %v1457
        %v2015 = vpack.c.bf16 %v1467, %v1463
        %v2016 = vpack.c.bf16 %v1469, %v1465
        %v2017 = vpack.c.bf16 %v1475, %v1471
        %v2018 = vpack.c.bf16 %v1477, %v1473
        %v2019 = vpack.c.bf16 %v1483, %v1479
        %v2020 = vpack.c.bf16 %v1485, %v1481
        %v2021 = vpack.c.bf16 %v1491, %v1487
        %v2022 = vpack.c.bf16 %v1493, %v1489
        %v2023 = vpack.c.bf16 %v1499, %v1495
        %v2024 = vpack.c.bf16 %v1501, %v1497
        %v2025 = vpack.c.bf16 %v1507, %v1503
        %v2026 = vpack.c.bf16 %v1509, %v1505
        %v2027 = vpack.c.bf16 %v1515, %v1511
        %v2028 = vpack.c.bf16 %v1517, %v1513
        %v2029 = vpack.c.bf16 %v1523, %v1519
        %v2030 = vpack.c.bf16 %v1525, %v1521
        %v2031 = vpack.c.bf16 %v1531, %v1527
        %v2032 = vpack.c.bf16 %v1533, %v1529
        %v2033 = vpack.c.bf16 %v1539, %v1535
        %v2034 = vpack.c.bf16 %v1541, %v1537
        %v2035 = vpack.c.bf16 %v1547, %v1543
        %v2036 = vpack.c.bf16 %v1549, %v1545
        %v2037 = vpack.c.bf16 %v1555, %v1551
        %v2038 = vpack.c.bf16 %v1557, %v1553
        %v2071 = vunpack.c.l.b16 %v469
        %v2072 = vunpack.c.l.b16 %v470
        %v2073 = vunpack.c.l.b16 %v471
        %v2074 = vunpack.c.l.b16 %v472
        %v2075 = vunpack.c.l.b16 %v473
        %v2076 = vunpack.c.l.b16 %v474
        %v2077 = vunpack.c.l.b16 %v475
        %v2078 = vunpack.c.l.b16 %v476
        %v2079 = vunpack.c.l.b16 %v477
        %v2080 = vunpack.c.l.b16 %v478
        %v2081 = vunpack.c.l.b16 %v479
        %v2082 = vunpack.c.l.b16 %v480
        %v2083 = vunpack.c.l.b16 %v481
        %v2084 = vunpack.c.l.b16 %v482
        %v2085 = vunpack.c.l.b16 %v483
        %v2086 = vunpack.c.l.b16 %v484
        %v2087 = vunpack.c.l.b16 %v485
        %v2088 = vunpack.c.l.b16 %v486
        %v2089 = vunpack.c.l.b16 %v487
        %v2090 = vunpack.c.l.b16 %v488
        %v2091 = vunpack.c.l.b16 %v489
        %v2092 = vunpack.c.l.b16 %v490
        %v2093 = vunpack.c.l.b16 %v491
        %v2094 = vunpack.c.l.b16 %v492
        %v2095 = vunpack.c.l.b16 %v493
        %v2096 = vunpack.c.l.b16 %v494
        %v2097 = vunpack.c.l.b16 %v495
        %v2098 = vunpack.c.l.b16 %v496
        %v2099 = vunpack.c.l.b16 %v497
        %v2100 = vunpack.c.l.b16 %v498
        %v2101 = vunpack.c.l.b16 %v499
        %v2102 = vunpack.c.l.b16 %v500
        %v2103 = vpack.c.b16 %v2072, %v2071
        %v2104 = vpack.c.b16 %v2074, %v2073
        %v2105 = vpack.c.b16 %v2076, %v2075
        %v2106 = vpack.c.b16 %v2078, %v2077
        %v2107 = vpack.c.b16 %v2080, %v2079
        %v2108 = vpack.c.b16 %v2082, %v2081
        %v2109 = vpack.c.b16 %v2084, %v2083
        %v2110 = vpack.c.b16 %v2086, %v2085
        %v2111 = vpack.c.b16 %v2088, %v2087
        %v2112 = vpack.c.b16 %v2090, %v2089
        %v2113 = vpack.c.b16 %v2092, %v2091
        %v2114 = vpack.c.b16 %v2094, %v2093
        %v2115 = vpack.c.b16 %v2096, %v2095
        %v2116 = vpack.c.b16 %v2098, %v2097
        %v2117 = vpack.c.b16 %v2100, %v2099
        %v2118 = vpack.c.b16 %v2102, %v2101
        %2135 = vmatprep.subr.bf16.mxu0 0
        %2136 = vmatpush1.bf16.msra.mxu0 %v2110
        %2137 = vmatprep.subr.bf16.mxu0 0
        %2138 = vmatpush1.bf16.msra.mxu0 %v2109
        %2139 = vmatprep.subr.bf16.mxu0 0
        %2140 = vmatpush1.bf16.msra.mxu0 %v2108
        %2141 = vmatprep.subr.bf16.mxu0 0
        %2142 = vmatpush1.bf16.msra.mxu0 %v2107
        %2143 = vmatprep.subr.bf16.mxu0 0
        %2144 = vmatpush1.bf16.msra.mxu0 %v2106
        %2145 = vmatprep.subr.bf16.mxu0 0
        %2146 = vmatpush1.bf16.msra.mxu0 %v2105
        %2147 = vmatprep.subr.bf16.mxu0 0
        %2148 = vmatpush1.bf16.msra.mxu0 %v2104
        %2149 = vmatprep.subr.bf16.mxu0 0
        %2150 = vmatpush1.bf16.msra.mxu0 %v2103
        %2151 = vmatprep.subr.bf16.mxu0 0
        %2152 = vmatpush2.bf16.msra.mxu0 %v2118
        %2153 = vmatprep.subr.bf16.mxu0 0
        %2154 = vmatpush2.bf16.msra.mxu0 %v2117
        %2155 = vmatprep.subr.bf16.mxu0 0
        %2156 = vmatpush2.bf16.msra.mxu0 %v2116
        %2157 = vmatprep.subr.bf16.mxu0 0
        %2158 = vmatpush2.bf16.msra.mxu0 %v2115
        %2159 = vmatprep.subr.bf16.mxu0 0
        %2160 = vmatpush2.bf16.msra.mxu0 %v2114
        %2161 = vmatprep.subr.bf16.mxu0 0
        %2162 = vmatpush2.bf16.msra.mxu0 %v2113
        %2163 = vmatprep.subr.bf16.mxu0 0
        %2164 = vmatpush2.bf16.msra.mxu0 %v2112
        %2165 = vmatprep.subr.bf16.mxu0 0
        %2166 = vmatpush2.bf16.msra.mxu0 %v2111
        %2167 = vmatprep.mubr.bf16.mxu0 %v2008
        %2168 = vmatmul.mubr.bf16.gmra.mxu0 %v2007
        %v2169 = vpop.f32.mrf.mxu0
        %v2170 = vadd.f32 0.0, %v2169
        %v2171 = vpop.f32.mrf.mxu0
        %v2172 = vpop.f32.mrf.mxu0
        %v2173 = vadd.f32 0.0, %v2172
        %v2174 = vpop.f32.mrf.mxu0
        %2175 = vmatprep.mubr.bf16.mxu0 %v2010
        %2176 = vmatmul.mubr.bf16.gmra.mxu0 %v2009
        %v2177 = vpop.f32.mrf.mxu0
        %v2178 = vadd.f32 0.0, %v2177
        %v2179 = vpop.f32.mrf.mxu0
        %v2180 = vpop.f32.mrf.mxu0
        %v2181 = vadd.f32 0.0, %v2180
        %v2182 = vpop.f32.mrf.mxu0
        %2183 = vmatprep.mubr.bf16.mxu0 %v2012
        %2184 = vmatmul.mubr.bf16.gmra.mxu0 %v2011
        %v2185 = vpop.f32.mrf.mxu0
        %v2186 = vadd.f32 0.0, %v2185
        %v2187 = vpop.f32.mrf.mxu0
        %v2188 = vpop.f32.mrf.mxu0
        %v2189 = vadd.f32 0.0, %v2188
        %v2190 = vpop.f32.mrf.mxu0
        %2191 = vmatprep.mubr.bf16.mxu0 %v2014
        %2192 = vmatmul.mubr.bf16.gmra.mxu0 %v2013
        %v2193 = vpop.f32.mrf.mxu0
        %v2194 = vadd.f32 0.0, %v2193
        %v2195 = vpop.f32.mrf.mxu0
        %v2196 = vpop.f32.mrf.mxu0
        %v2197 = vadd.f32 0.0, %v2196
        %v2198 = vpop.f32.mrf.mxu0
        %2199 = vmatprep.mubr.bf16.mxu0 %v2016
        %2200 = vmatmul.mubr.bf16.gmra.mxu0 %v2015
        %v2201 = vpop.f32.mrf.mxu0
        %v2202 = vadd.f32 0.0, %v2201
        %v2203 = vpop.f32.mrf.mxu0
        %v2204 = vpop.f32.mrf.mxu0
        %v2205 = vadd.f32 0.0, %v2204
        %v2206 = vpop.f32.mrf.mxu0
        %2207 = vmatprep.mubr.bf16.mxu0 %v2018
        %2208 = vmatmul.mubr.bf16.gmra.mxu0 %v2017
        %v2209 = vpop.f32.mrf.mxu0
        %v2210 = vadd.f32 0.0, %v2209
        %v2211 = vpop.f32.mrf.mxu0
        %v2212 = vpop.f32.mrf.mxu0
        %v2213 = vadd.f32 0.0, %v2212
        %v2214 = vpop.f32.mrf.mxu0
        %2215 = vmatprep.mubr.bf16.mxu0 %v2020
        %2216 = vmatmul.mubr.bf16.gmra.mxu0 %v2019
        %v2217 = vpop.f32.mrf.mxu0
        %v2218 = vadd.f32 0.0, %v2217
        %v2219 = vpop.f32.mrf.mxu0
        %v2220 = vpop.f32.mrf.mxu0
        %v2221 = vadd.f32 0.0, %v2220
        %v2222 = vpop.f32.mrf.mxu0
        %2223 = vmatprep.mubr.bf16.mxu0 %v2022
        %2224 = vmatmul.mubr.bf16.gmra.mxu0 %v2021
        %v2225 = vpop.f32.mrf.mxu0
        %v2226 = vadd.f32 0.0, %v2225
        %v2227 = vpop.f32.mrf.mxu0
        %v2228 = vpop.f32.mrf.mxu0
        %v2229 = vadd.f32 0.0, %v2228
        %v2230 = vpop.f32.mrf.mxu0
        %2231 = vmatprep.mubr.bf16.mxu0 %v2024
        %2232 = vmatmul.mubr.bf16.gmra.mxu0 %v2023
        %v2233 = vpop.f32.mrf.mxu0
        %v2234 = vadd.f32 0.0, %v2233
        %v2235 = vpop.f32.mrf.mxu0
        %v2236 = vpop.f32.mrf.mxu0
        %v2237 = vadd.f32 0.0, %v2236
        %v2238 = vpop.f32.mrf.mxu0
        %2239 = vmatprep.mubr.bf16.mxu0 %v2026
        %2240 = vmatmul.mubr.bf16.gmra.mxu0 %v2025
        %v2241 = vpop.f32.mrf.mxu0
        %v2242 = vadd.f32 0.0, %v2241
        %v2243 = vpop.f32.mrf.mxu0
        %v2244 = vpop.f32.mrf.mxu0
        %v2245 = vadd.f32 0.0, %v2244
        %v2246 = vpop.f32.mrf.mxu0
        %2247 = vmatprep.mubr.bf16.mxu0 %v2028
        %2248 = vmatmul.mubr.bf16.gmra.mxu0 %v2027
        %v2249 = vpop.f32.mrf.mxu0
        %v2250 = vadd.f32 0.0, %v2249
        %v2251 = vpop.f32.mrf.mxu0
        %v2252 = vpop.f32.mrf.mxu0
        %v2253 = vadd.f32 0.0, %v2252
        %v2254 = vpop.f32.mrf.mxu0
        %2255 = vmatprep.mubr.bf16.mxu0 %v2030
        %2256 = vmatmul.mubr.bf16.gmra.mxu0 %v2029
        %v2257 = vpop.f32.mrf.mxu0
        %v2258 = vadd.f32 0.0, %v2257
        %v2259 = vpop.f32.mrf.mxu0
        %v2260 = vpop.f32.mrf.mxu0
        %v2261 = vadd.f32 0.0, %v2260
        %v2262 = vpop.f32.mrf.mxu0
        %2263 = vmatprep.mubr.bf16.mxu0 %v2032
        %2264 = vmatmul.mubr.bf16.gmra.mxu0 %v2031
        %v2265 = vpop.f32.mrf.mxu0
        %v2266 = vadd.f32 0.0, %v2265
        %v2267 = vpop.f32.mrf.mxu0
        %v2268 = vpop.f32.mrf.mxu0
        %v2269 = vadd.f32 0.0, %v2268
        %v2270 = vpop.f32.mrf.mxu0
        %2271 = vmatprep.mubr.bf16.mxu0 %v2034
        %2272 = vmatmul.mubr.bf16.gmra.mxu0 %v2033
        %v2273 = vpop.f32.mrf.mxu0
        %v2274 = vadd.f32 0.0, %v2273
        %v2275 = vpop.f32.mrf.mxu0
        %v2276 = vpop.f32.mrf.mxu0
        %v2277 = vadd.f32 0.0, %v2276
        %v2278 = vpop.f32.mrf.mxu0
        %2279 = vmatprep.mubr.bf16.mxu0 %v2036
        %2280 = vmatmul.mubr.bf16.gmra.mxu0 %v2035
        %v2281 = vpop.f32.mrf.mxu0
        %v2282 = vadd.f32 0.0, %v2281
        %v2283 = vpop.f32.mrf.mxu0
        %v2284 = vpop.f32.mrf.mxu0
        %v2285 = vadd.f32 0.0, %v2284
        %v2286 = vpop.f32.mrf.mxu0
        %2287 = vmatprep.mubr.bf16.mxu0 %v2038
        %2288 = vmatmul.mubr.bf16.gmra.mxu0 %v2037
        %v2289 = vpop.f32.mrf.mxu0
        %v2290 = vadd.f32 0.0, %v2289
        %v2291 = vpop.f32.mrf.mxu0
        %v2292 = vpop.f32.mrf.mxu0
        %v2293 = vadd.f32 0.0, %v2292
        %v2294 = vpop.f32.mrf.mxu0
        %2295 = vdwg.mxu0
        %v2296 = vadd.f32 %v1975, %v2170
        %v2297 = vadd.f32 %v1976, %v2173
        %v2298 = vadd.f32 %v1977, %v2178
        %v2299 = vadd.f32 %v1978, %v2181
        %v2300 = vadd.f32 %v1979, %v2186
        %v2301 = vadd.f32 %v1980, %v2189
        %v2302 = vadd.f32 %v1981, %v2194
        %v2303 = vadd.f32 %v1982, %v2197
        %v2304 = vadd.f32 %v1983, %v2202
        %v2305 = vadd.f32 %v1984, %v2205
        %v2306 = vadd.f32 %v1985, %v2210
        %v2307 = vadd.f32 %v1986, %v2213
        %v2308 = vadd.f32 %v1987, %v2218
        %v2309 = vadd.f32 %v1988, %v2221
        %v2310 = vadd.f32 %v1989, %v2226
        %v2311 = vadd.f32 %v1990, %v2229
        %v2312 = vadd.f32 %v1991, %v2234
        %v2313 = vadd.f32 %v1992, %v2237
        %v2314 = vadd.f32 %v1993, %v2242
        %v2315 = vadd.f32 %v1994, %v2245
        %v2316 = vadd.f32 %v1995, %v2250
        %v2317 = vadd.f32 %v1996, %v2253
        %v2318 = vadd.f32 %v1997, %v2258
        %v2319 = vadd.f32 %v1998, %v2261
        %v2320 = vadd.f32 %v1999, %v2266
        %v2321 = vadd.f32 %v2000, %v2269
        %v2322 = vadd.f32 %v2001, %v2274
        %v2323 = vadd.f32 %v2002, %v2277
        %v2324 = vadd.f32 %v2003, %v2282
        %v2325 = vadd.f32 %v2004, %v2285
        %v2326 = vadd.f32 %v2005, %v2290
        %v2327 = vadd.f32 %v2006, %v2293
        %2328 = vst [vmem:[#allocation4] sm:$0xff] %v2296
        %2329 = vst [vmem:[#allocation4 + $0x8] sm:$0xff] %v2297
        %2330 = vst [vmem:[#allocation4 + $0x10] sm:$0xff] %v2298
        %2331 = vst [vmem:[#allocation4 + $0x18] sm:$0xff] %v2299
        %2332 = vst [vmem:[#allocation4 + $0x20] sm:$0xff] %v2300
        %2333 = vst [vmem:[#allocation4 + $0x28] sm:$0xff] %v2301
        %2334 = vst [vmem:[#allocation4 + $0x30] sm:$0xff] %v2302
        %2335 = vst [vmem:[#allocation4 + $0x38] sm:$0xff] %v2303
        %2336 = vst [vmem:[#allocation4 + $0x40] sm:$0xff] %v2304
        %2337 = vst [vmem:[#allocation4 + $0x48] sm:$0xff] %v2305
        %2338 = vst [vmem:[#allocation4 + $0x50] sm:$0xff] %v2306
        %2339 = vst [vmem:[#allocation4 + $0x58] sm:$0xff] %v2307
        %2340 = vst [vmem:[#allocation4 + $0x60] sm:$0xff] %v2308
        %2341 = vst [vmem:[#allocation4 + $0x68] sm:$0xff] %v2309
        %2342 = vst [vmem:[#allocation4 + $0x70] sm:$0xff] %v2310
        %2343 = vst [vmem:[#allocation4 + $0x78] sm:$0xff] %v2311
        %2344 = vst [vmem:[#allocation4 + $0x80] sm:$0xff] %v2312
        %2345 = vst [vmem:[#allocation4 + $0x88] sm:$0xff] %v2313
        %2346 = vst [vmem:[#allocation4 + $0x90] sm:$0xff] %v2314
        %2347 = vst [vmem:[#allocation4 + $0x98] sm:$0xff] %v2315
        %2348 = vst [vmem:[#allocation4 + $0xa0] sm:$0xff] %v2316
        %2349 = vst [vmem:[#allocation4 + $0xa8] sm:$0xff] %v2317
        %2350 = vst [vmem:[#allocation4 + $0xb0] sm:$0xff] %v2318
        %2351 = vst [vmem:[#allocation4 + $0xb8] sm:$0xff] %v2319
        %2352 = vst [vmem:[#allocation4 + $0xc0] sm:$0xff] %v2320
        %2353 = vst [vmem:[#allocation4 + $0xc8] sm:$0xff] %v2321
        %2354 = vst [vmem:[#allocation4 + $0xd0] sm:$0xff] %v2322
        %2355 = vst [vmem:[#allocation4 + $0xd8] sm:$0xff] %v2323
        %2356 = vst [vmem:[#allocation4 + $0xe0] sm:$0xff] %v2324
        %2357 = vst [vmem:[#allocation4 + $0xe8] sm:$0xff] %v2325
        %2358 = vst [vmem:[#allocation4 + $0xf0] sm:$0xff] %v2326
        %2359 = vst [vmem:[#allocation4 + $0xf8] sm:$0xff] %v2327
        %2360 = vst.msk [vmem:[#allocation2] sm:$0xff] %vm1750, %v1078
        %2361 = vst.msk [vmem:[#allocation2 + $0x8] sm:$0xff] %vm1750, %v1079
        %2362 = vst.msk [vmem:[#allocation2 + $0x10] sm:$0xff] %vm1750, %v1080
        %2363 = vst.msk [vmem:[#allocation2 + $0x18] sm:$0xff] %vm1750, %v1081
        %2364 = vst.msk [vmem:[#allocation2 + $0x20] sm:$0xff] %vm1750, %v1082
        %2365 = vst.msk [vmem:[#allocation2 + $0x28] sm:$0xff] %vm1750, %v1083
        %2366 = vst.msk [vmem:[#allocation2 + $0x30] sm:$0xff] %vm1750, %v1084
        %2367 = vst.msk [vmem:[#allocation2 + $0x38] sm:$0xff] %vm1750, %v1085
        %2368 = vst.msk [vmem:[#allocation2 + $0x40] sm:$0xff] %vm1750, %v1086
        %2369 = vst.msk [vmem:[#allocation2 + $0x48] sm:$0xff] %vm1750, %v1087
        %2370 = vst.msk [vmem:[#allocation2 + $0x50] sm:$0xff] %vm1750, %v1088
        %2371 = vst.msk [vmem:[#allocation2 + $0x58] sm:$0xff] %vm1750, %v1089
        %2372 = vst.msk [vmem:[#allocation2 + $0x60] sm:$0xff] %vm1750, %v1090
        %2373 = vst.msk [vmem:[#allocation2 + $0x68] sm:$0xff] %vm1750, %v1091
        %2374 = vst.msk [vmem:[#allocation2 + $0x70] sm:$0xff] %vm1750, %v1092
        %2375 = vst.msk [vmem:[#allocation2 + $0x78] sm:$0xff] %vm1750, %v1093
        %2376 = vst.msk [vmem:[#allocation2 + $0x80] sm:$0xff] %vm1750, %v1094
        %2377 = vst.msk [vmem:[#allocation2 + $0x88] sm:$0xff] %vm1750, %v1095
        %2378 = vst.msk [vmem:[#allocation2 + $0x90] sm:$0xff] %vm1750, %v1096
        %2379 = vst.msk [vmem:[#allocation2 + $0x98] sm:$0xff] %vm1750, %v1097
        %2380 = vst.msk [vmem:[#allocation2 + $0xa0] sm:$0xff] %vm1750, %v1098
        %2381 = vst.msk [vmem:[#allocation2 + $0xa8] sm:$0xff] %vm1750, %v1099
        %2382 = vst.msk [vmem:[#allocation2 + $0xb0] sm:$0xff] %vm1750, %v1100
        %2383 = vst.msk [vmem:[#allocation2 + $0xb8] sm:$0xff] %vm1750, %v1101
        %2384 = vst.msk [vmem:[#allocation2 + $0xc0] sm:$0xff] %vm1750, %v1102
        %2385 = vst.msk [vmem:[#allocation2 + $0xc8] sm:$0xff] %vm1750, %v1103
        %2386 = vst.msk [vmem:[#allocation2 + $0xd0] sm:$0xff] %vm1750, %v1104
        %2387 = vst.msk [vmem:[#allocation2 + $0xd8] sm:$0xff] %vm1750, %v1105
        %2388 = vst.msk [vmem:[#allocation2 + $0xe0] sm:$0xff] %vm1750, %v1106
        %2389 = vst.msk [vmem:[#allocation2 + $0xe8] sm:$0xff] %vm1750, %v1107
        %2390 = vst.msk [vmem:[#allocation2 + $0xf0] sm:$0xff] %vm1750, %v1108
        %2391 = vst.msk [vmem:[#allocation2 + $0xf8] sm:$0xff] %vm1750, %v1109
        // Predicated region
        $region49: #{tpu_custom_call.1} parent=31 // pred_check
          %p2392 = pneg %p304
        $region50: #{tpu_custom_call.1} parent=31 // pred_check_branch
          %2394 = sbr.rel (%p2392) target = $region52
        $region51: #{tpu_custom_call.1} parent=31 // pred_region
          %v2395 = vld [vmem:[#allocation3] sm:$0xff]
          %v2396 = vld [vmem:[#allocation3 + $0x8] sm:$0xff]
          %v2397 = vld [vmem:[#allocation3 + $0x10] sm:$0xff]
          %v2398 = vld [vmem:[#allocation3 + $0x18] sm:$0xff]
          %v2399 = vld [vmem:[#allocation3 + $0x20] sm:$0xff]
          %v2400 = vld [vmem:[#allocation3 + $0x28] sm:$0xff]
          %v2401 = vld [vmem:[#allocation3 + $0x30] sm:$0xff]
          %v2402 = vld [vmem:[#allocation3 + $0x38] sm:$0xff]
          %v2403 = vld [vmem:[#allocation3 + $0x40] sm:$0xff]
          %v2404 = vld [vmem:[#allocation3 + $0x48] sm:$0xff]
          %v2405 = vld [vmem:[#allocation3 + $0x50] sm:$0xff]
          %v2406 = vld [vmem:[#allocation3 + $0x58] sm:$0xff]
          %v2407 = vld [vmem:[#allocation3 + $0x60] sm:$0xff]
          %v2408 = vld [vmem:[#allocation3 + $0x68] sm:$0xff]
          %v2409 = vld [vmem:[#allocation3 + $0x70] sm:$0xff]
          %v2410 = vld [vmem:[#allocation3 + $0x78] sm:$0xff]
          %v2411 = vld [vmem:[#allocation3 + $0x80] sm:$0xff]
          %v2412 = vld [vmem:[#allocation3 + $0x88] sm:$0xff]
          %v2413 = vld [vmem:[#allocation3 + $0x90] sm:$0xff]
          %v2414 = vld [vmem:[#allocation3 + $0x98] sm:$0xff]
          %v2415 = vld [vmem:[#allocation3 + $0xa0] sm:$0xff]
          %v2416 = vld [vmem:[#allocation3 + $0xa8] sm:$0xff]
          %v2417 = vld [vmem:[#allocation3 + $0xb0] sm:$0xff]
          %v2418 = vld [vmem:[#allocation3 + $0xb8] sm:$0xff]
          %v2419 = vld [vmem:[#allocation3 + $0xc0] sm:$0xff]
          %v2420 = vld [vmem:[#allocation3 + $0xc8] sm:$0xff]
          %v2421 = vld [vmem:[#allocation3 + $0xd0] sm:$0xff]
          %v2422 = vld [vmem:[#allocation3 + $0xd8] sm:$0xff]
          %v2423 = vld [vmem:[#allocation3 + $0xe0] sm:$0xff]
          %v2424 = vld [vmem:[#allocation3 + $0xe8] sm:$0xff]
          %v2425 = vld [vmem:[#allocation3 + $0xf0] sm:$0xff]
          %v2426 = vld [vmem:[#allocation3 + $0xf8] sm:$0xff]
          %v2427 = vrcp.pop %v2395
          %v2428 = vrcp.pop %v2396
          %v2429 = vrcp.pop %v2397
          %v2430 = vrcp.pop %v2398
          %v2431 = vrcp.pop %v2399
          %v2432 = vrcp.pop %v2400
          %v2433 = vrcp.pop %v2401
          %v2434 = vrcp.pop %v2402
          %v2435 = vrcp.pop %v2403
          %v2436 = vrcp.pop %v2404
          %v2437 = vrcp.pop %v2405
          %v2438 = vrcp.pop %v2406
          %v2439 = vrcp.pop %v2407
          %v2440 = vrcp.pop %v2408
          %v2441 = vrcp.pop %v2409
          %v2442 = vrcp.pop %v2410
          %v2443 = vrcp.pop %v2411
          %v2444 = vrcp.pop %v2412
          %v2445 = vrcp.pop %v2413
          %v2446 = vrcp.pop %v2414
          %v2447 = vrcp.pop %v2415
          %v2448 = vrcp.pop %v2416
          %v2449 = vrcp.pop %v2417
          %v2450 = vrcp.pop %v2418
          %v2451 = vrcp.pop %v2419
          %v2452 = vrcp.pop %v2420
          %v2453 = vrcp.pop %v2421
          %v2454 = vrcp.pop %v2422
          %v2455 = vrcp.pop %v2423
          %v2456 = vrcp.pop %v2424
          %v2457 = vrcp.pop %v2425
          %v2458 = vrcp.pop %v2426
          %v2459 = vld [vmem:[#allocation4] sm:$0xff]
          %v2460 = vld [vmem:[#allocation4 + $0x8] sm:$0xff]
          %v2461 = vld [vmem:[#allocation4 + $0x10] sm:$0xff]
          %v2462 = vld [vmem:[#allocation4 + $0x18] sm:$0xff]
          %v2463 = vld [vmem:[#allocation4 + $0x20] sm:$0xff]
          %v2464 = vld [vmem:[#allocation4 + $0x28] sm:$0xff]
          %v2465 = vld [vmem:[#allocation4 + $0x30] sm:$0xff]
          %v2466 = vld [vmem:[#allocation4 + $0x38] sm:$0xff]
          %v2467 = vld [vmem:[#allocation4 + $0x40] sm:$0xff]
          %v2468 = vld [vmem:[#allocation4 + $0x48] sm:$0xff]
          %v2469 = vld [vmem:[#allocation4 + $0x50] sm:$0xff]
          %v2470 = vld [vmem:[#allocation4 + $0x58] sm:$0xff]
          %v2471 = vld [vmem:[#allocation4 + $0x60] sm:$0xff]
          %v2472 = vld [vmem:[#allocation4 + $0x68] sm:$0xff]
          %v2473 = vld [vmem:[#allocation4 + $0x70] sm:$0xff]
          %v2474 = vld [vmem:[#allocation4 + $0x78] sm:$0xff]
          %v2475 = vld [vmem:[#allocation4 + $0x80] sm:$0xff]
          %v2476 = vld [vmem:[#allocation4 + $0x88] sm:$0xff]
          %v2477 = vld [vmem:[#allocation4 + $0x90] sm:$0xff]
          %v2478 = vld [vmem:[#allocation4 + $0x98] sm:$0xff]
          %v2479 = vld [vmem:[#allocation4 + $0xa0] sm:$0xff]
          %v2480 = vld [vmem:[#allocation4 + $0xa8] sm:$0xff]
          %v2481 = vld [vmem:[#allocation4 + $0xb0] sm:$0xff]
          %v2482 = vld [vmem:[#allocation4 + $0xb8] sm:$0xff]
          %v2483 = vld [vmem:[#allocation4 + $0xc0] sm:$0xff]
          %v2484 = vld [vmem:[#allocation4 + $0xc8] sm:$0xff]
          %v2485 = vld [vmem:[#allocation4 + $0xd0] sm:$0xff]
          %v2486 = vld [vmem:[#allocation4 + $0xd8] sm:$0xff]
          %v2487 = vld [vmem:[#allocation4 + $0xe0] sm:$0xff]
          %v2488 = vld [vmem:[#allocation4 + $0xe8] sm:$0xff]
          %v2489 = vld [vmem:[#allocation4 + $0xf0] sm:$0xff]
          %v2490 = vld [vmem:[#allocation4 + $0xf8] sm:$0xff]
          %2492 = vset.pattern.permute.xlu0 0
          %2493 = vperm.xlu0 %2492, %v2427
          %v2494 = vpop.permute.xlu0 %2493
          %2497 = vset.pattern.permute.xlu0 0
          %2498 = vperm.xlu0 %2497, %v2428
          %v2499 = vpop.permute.xlu0 %2498
          %2502 = vset.pattern.permute.xlu0 0
          %2503 = vperm.xlu0 %2502, %v2429
          %v2504 = vpop.permute.xlu0 %2503
          %2507 = vset.pattern.permute.xlu0 0
          %2508 = vperm.xlu0 %2507, %v2430
          %v2509 = vpop.permute.xlu0 %2508
          %2512 = vset.pattern.permute.xlu0 0
          %2513 = vperm.xlu0 %2512, %v2431
          %v2514 = vpop.permute.xlu0 %2513
          %2517 = vset.pattern.permute.xlu0 0
          %2518 = vperm.xlu0 %2517, %v2432
          %v2519 = vpop.permute.xlu0 %2518
          %2522 = vset.pattern.permute.xlu0 0
          %2523 = vperm.xlu0 %2522, %v2433
          %v2524 = vpop.permute.xlu0 %2523
          %2527 = vset.pattern.permute.xlu0 0
          %2528 = vperm.xlu0 %2527, %v2434
          %v2529 = vpop.permute.xlu0 %2528
          %2532 = vset.pattern.permute.xlu0 0
          %2533 = vperm.xlu0 %2532, %v2435
          %v2534 = vpop.permute.xlu0 %2533
          %2537 = vset.pattern.permute.xlu0 0
          %2538 = vperm.xlu0 %2537, %v2436
          %v2539 = vpop.permute.xlu0 %2538
          %2542 = vset.pattern.permute.xlu0 0
          %2543 = vperm.xlu0 %2542, %v2437
          %v2544 = vpop.permute.xlu0 %2543
          %2547 = vset.pattern.permute.xlu0 0
          %2548 = vperm.xlu0 %2547, %v2438
          %v2549 = vpop.permute.xlu0 %2548
          %2552 = vset.pattern.permute.xlu0 0
          %2553 = vperm.xlu0 %2552, %v2439
          %v2554 = vpop.permute.xlu0 %2553
          %2557 = vset.pattern.permute.xlu0 0
          %2558 = vperm.xlu0 %2557, %v2440
          %v2559 = vpop.permute.xlu0 %2558
          %2562 = vset.pattern.permute.xlu0 0
          %2563 = vperm.xlu0 %2562, %v2441
          %v2564 = vpop.permute.xlu0 %2563
          %2567 = vset.pattern.permute.xlu0 0
          %2568 = vperm.xlu0 %2567, %v2442
          %v2569 = vpop.permute.xlu0 %2568
          %2572 = vset.pattern.permute.xlu0 0
          %2573 = vperm.xlu0 %2572, %v2443
          %v2574 = vpop.permute.xlu0 %2573
          %2577 = vset.pattern.permute.xlu0 0
          %2578 = vperm.xlu0 %2577, %v2444
          %v2579 = vpop.permute.xlu0 %2578
          %2582 = vset.pattern.permute.xlu0 0
          %2583 = vperm.xlu0 %2582, %v2445
          %v2584 = vpop.permute.xlu0 %2583
          %2587 = vset.pattern.permute.xlu0 0
          %2588 = vperm.xlu0 %2587, %v2446
          %v2589 = vpop.permute.xlu0 %2588
          %2592 = vset.pattern.permute.xlu0 0
          %2593 = vperm.xlu0 %2592, %v2447
          %v2594 = vpop.permute.xlu0 %2593
          %2597 = vset.pattern.permute.xlu0 0
          %2598 = vperm.xlu0 %2597, %v2448
          %v2599 = vpop.permute.xlu0 %2598
          %2602 = vset.pattern.permute.xlu0 0
          %2603 = vperm.xlu0 %2602, %v2449
          %v2604 = vpop.permute.xlu0 %2603
          %2607 = vset.pattern.permute.xlu0 0
          %2608 = vperm.xlu0 %2607, %v2450
          %v2609 = vpop.permute.xlu0 %2608
          %2612 = vset.pattern.permute.xlu0 0
          %2613 = vperm.xlu0 %2612, %v2451
          %v2614 = vpop.permute.xlu0 %2613
          %2617 = vset.pattern.permute.xlu0 0
          %2618 = vperm.xlu0 %2617, %v2452
          %v2619 = vpop.permute.xlu0 %2618
          %2622 = vset.pattern.permute.xlu0 0
          %2623 = vperm.xlu0 %2622, %v2453
          %v2624 = vpop.permute.xlu0 %2623
          %2627 = vset.pattern.permute.xlu0 0
          %2628 = vperm.xlu0 %2627, %v2454
          %v2629 = vpop.permute.xlu0 %2628
          %2632 = vset.pattern.permute.xlu0 0
          %2633 = vperm.xlu0 %2632, %v2455
          %v2634 = vpop.permute.xlu0 %2633
          %2637 = vset.pattern.permute.xlu0 0
          %2638 = vperm.xlu0 %2637, %v2456
          %v2639 = vpop.permute.xlu0 %2638
          %2642 = vset.pattern.permute.xlu0 0
          %2643 = vperm.xlu0 %2642, %v2457
          %v2644 = vpop.permute.xlu0 %2643
          %2647 = vset.pattern.permute.xlu0 0
          %2648 = vperm.xlu0 %2647, %v2458
          %v2649 = vpop.permute.xlu0 %2648
          %v2651 = vmul.f32 %v2459, %v2494
          %v2652 = vmul.f32 %v2460, %v2499
          %v2653 = vmul.f32 %v2461, %v2504
          %v2654 = vmul.f32 %v2462, %v2509
          %v2655 = vmul.f32 %v2463, %v2514
          %v2656 = vmul.f32 %v2464, %v2519
          %v2657 = vmul.f32 %v2465, %v2524
          %v2658 = vmul.f32 %v2466, %v2529
          %v2659 = vmul.f32 %v2467, %v2534
          %v2660 = vmul.f32 %v2468, %v2539
          %v2661 = vmul.f32 %v2469, %v2544
          %v2662 = vmul.f32 %v2470, %v2549
          %v2663 = vmul.f32 %v2471, %v2554
          %v2664 = vmul.f32 %v2472, %v2559
          %v2665 = vmul.f32 %v2473, %v2564
          %v2666 = vmul.f32 %v2474, %v2569
          %v2667 = vmul.f32 %v2475, %v2574
          %v2668 = vmul.f32 %v2476, %v2579
          %v2669 = vmul.f32 %v2477, %v2584
          %v2670 = vmul.f32 %v2478, %v2589
          %v2671 = vmul.f32 %v2479, %v2594
          %v2672 = vmul.f32 %v2480, %v2599
          %v2673 = vmul.f32 %v2481, %v2604
          %v2674 = vmul.f32 %v2482, %v2609
          %v2675 = vmul.f32 %v2483, %v2614
          %v2676 = vmul.f32 %v2484, %v2619
          %v2677 = vmul.f32 %v2485, %v2624
          %v2678 = vmul.f32 %v2486, %v2629
          %v2679 = vmul.f32 %v2487, %v2634
          %v2680 = vmul.f32 %v2488, %v2639
          %v2681 = vmul.f32 %v2489, %v2644
          %v2682 = vmul.f32 %v2490, %v2649
          %2683 = vst [vmem:[%s298] sm:$0xff] %v2651
          %2684 = vst [vmem:[%s298 + $0x8] sm:$0xff] %v2652
          %2685 = vst [vmem:[%s298 + $0x10] sm:$0xff] %v2653
          %2686 = vst [vmem:[%s298 + $0x18] sm:$0xff] %v2654
          %2687 = vst [vmem:[%s298 + $0x20] sm:$0xff] %v2655
          %2688 = vst [vmem:[%s298 + $0x28] sm:$0xff] %v2656
          %2689 = vst [vmem:[%s298 + $0x30] sm:$0xff] %v2657
          %2690 = vst [vmem:[%s298 + $0x38] sm:$0xff] %v2658
          %2691 = vst [vmem:[%s298 + $0x40] sm:$0xff] %v2659
          %2692 = vst [vmem:[%s298 + $0x48] sm:$0xff] %v2660
          %2693 = vst [vmem:[%s298 + $0x50] sm:$0xff] %v2661
          %2694 = vst [vmem:[%s298 + $0x58] sm:$0xff] %v2662
          %2695 = vst [vmem:[%s298 + $0x60] sm:$0xff] %v2663
          %2696 = vst [vmem:[%s298 + $0x68] sm:$0xff] %v2664
          %2697 = vst [vmem:[%s298 + $0x70] sm:$0xff] %v2665
          %2698 = vst [vmem:[%s298 + $0x78] sm:$0xff] %v2666
          %2699 = vst [vmem:[%s298 + $0x80] sm:$0xff] %v2667
          %2700 = vst [vmem:[%s298 + $0x88] sm:$0xff] %v2668
          %2701 = vst [vmem:[%s298 + $0x90] sm:$0xff] %v2669
          %2702 = vst [vmem:[%s298 + $0x98] sm:$0xff] %v2670
          %2703 = vst [vmem:[%s298 + $0xa0] sm:$0xff] %v2671
          %2704 = vst [vmem:[%s298 + $0xa8] sm:$0xff] %v2672
          %2705 = vst [vmem:[%s298 + $0xb0] sm:$0xff] %v2673
          %2706 = vst [vmem:[%s298 + $0xb8] sm:$0xff] %v2674
          %2707 = vst [vmem:[%s298 + $0xc0] sm:$0xff] %v2675
          %2708 = vst [vmem:[%s298 + $0xc8] sm:$0xff] %v2676
          %2709 = vst [vmem:[%s298 + $0xd0] sm:$0xff] %v2677
          %2710 = vst [vmem:[%s298 + $0xd8] sm:$0xff] %v2678
          %2711 = vst [vmem:[%s298 + $0xe0] sm:$0xff] %v2679
          %2712 = vst [vmem:[%s298 + $0xe8] sm:$0xff] %v2680
          %2713 = vst [vmem:[%s298 + $0xf0] sm:$0xff] %v2681
          %2714 = vst [vmem:[%s298 + $0xf8] sm:$0xff] %v2682
        $region52: #{tpu_custom_call.1} parent=31 // pred_fallthru
          _
        %s2715 = sand.u32 %s136, 1
        %s2716 = scalar_lea.sflag [#allocation7], %s2715
        %s2717 = sand.u32 %s136, 1
        %s2718 = smul.addr %s2717, 256
        %s2719 = scalar_lea.vmem [#allocation11], %s2718
        // Predicated region
        $region53: #{tpu_custom_call.1} parent=31 // pred_check
          %p2720 = pneg %p146
        $region54: #{tpu_custom_call.1} parent=31 // pred_check_branch
          %2722 = sbr.rel (%p2720) target = $region56
        $region55: #{tpu_custom_call.1} parent=31 // pred_region
          %s2723 = smul.u32 32, %s29
          %s2725 = ssub.s32 4096, 4096
          %2726 = vsyncadd %s2716, %s2725
          %s2727 = smul.addr %s28, 32
          %s2728 = sadd.s32 %s2723, %s2727
          %s2729 = smul.addr %s2728, 128
          %s2730 = scalar_lea.hbm %s3, %s2729
          %s2731 = sshll.u32 %s2719, 4
          %s2732 = int_to_ptr.vmem [resolvable:$true] %s2731
          %2737 = dma.vmem_to_hbm [thread:$0]  %s2732, 4096, %s2730, %s2716, 128, 128, 8
        $region56: #{tpu_custom_call.1} parent=31 // pred_fallthru
          _
      $region32: #{tpu_custom_call.1} parent=5 // pred_fallthru
        _
      %p2738 = scmp.le.s32.totalorder 2, %s18
      // Predicated region
      $region57: #{tpu_custom_call.1} parent=5 // pred_check
        %p2739 = pneg %p2738
      $region58: #{tpu_custom_call.1} parent=5 // pred_check_branch
        %2741 = sbr.rel (%p2739) target = $region60
      $region59: #{tpu_custom_call.1} parent=5 // pred_region
        %s2742 = ssub.s32 %s18, 2
        // Predicated region
        $region61: #{tpu_custom_call.1} parent=59 // pred_check
          %p2743 = pneg %p152
        $region62: #{tpu_custom_call.1} parent=59 // pred_check_branch
          %2745 = sbr.rel (%p2743) target = $region64
        $region63: #{tpu_custom_call.1} parent=59 // pred_region
          %s2746 = sand.u32 %s137, 1
          %s2747 = scalar_lea.sflag [#allocation7], %s2746
          %s2748 = sand.u32 %s137, 1
          %s2749 = smul.addr %s2748, 256
          %s2750 = scalar_lea.vmem [#allocation11], %s2749
          %2751 = dma.done %s2747, 4096
        $region64: #{tpu_custom_call.1} parent=59 // pred_fallthru
          _
      $region60: #{tpu_custom_call.1} parent=5 // pred_fallthru
        _
    $region6: #{tpu_custom_call.1} parent=1 // loop_footer
      %s22 = sadd.s32 1, %s18
    $region7: #{tpu_custom_call.1} parent=1 // loop_footer_branch
      %17 = sbr.rel target = $region3
    $region8: #{tpu_custom_call.1} parent=1 // loop_exit
      _
    %2752 = vsyncpa [#allocation6], 1
    %s2753 = scalar_lea.sflag [#allocation6], 1
    %2754 = vsyncpa %s2753, 1
    %2755 = vsyncpa [#allocation9], 1
    %s2756 = scalar_lea.sflag [#allocation9], 1
    %2757 = vsyncpa %s2756, 1
    %2758 = vsyncpa [#allocation7], 1
    %s2759 = scalar_lea.sflag [#allocation7], 1
    %2760 = vsyncpa %s2759, 1

</llo_original>
